<compile_context>
chip_gen: v7x
topology: tpu7x:2x2x1
jax: 0.10.0
libtpu: 0.0.40
codegen_flags: <defaults>
</compile_context>

<pallas_src>
import math
from functools import partial

import jax
import jax.numpy as jnp
from jax.experimental import pallas as pl
from jax.experimental.pallas import tpu as pltpu


# --------------------------------------------------------------------------- #
# helpers
# --------------------------------------------------------------------------- #
def _pick_tile(n, prefs):
    for t in prefs:
        if n % t == 0:
            return t
    return n


# --------------------------------------------------------------------------- #
# Kernel 1: stacked linear   y[s] = x[s] @ wT[s] + b[s]
#   stack=3 for fused Q/K/V projection, stack=1 for the output projection.
#   Weights are pre-transposed to (Din, Dout) and pre-cast to bf16.
# --------------------------------------------------------------------------- #
def _stacked_linear_kernel(x_ref, w_ref, b_ref, o_ref):
    x = x_ref[0].astype(jnp.bfloat16)          # bf16 MXU feed
    w = w_ref[0].astype(jnp.bfloat16)
    o_ref[0] = (jnp.dot(x, w, preferred_element_type=jnp.float32)
                + b_ref[0]).astype(o_ref.dtype)


def pallas_stacked_linear(x_stk, wT_stk, b_stk):
    """x: (S, M, Din), wT: (S, Din, Dout) pre-transposed bf16, b: (S, 1, Dout)."""
    S, M, Din = x_stk.shape
    Dout = wT_stk.shape[2]
    tm = _pick_tile(M, (512, 256, 128))        # <=512: fits v5e scoped-VMEM default
    return pl.pallas_call(
        _stacked_linear_kernel,
        out_shape=jax.ShapeDtypeStruct((S, M, Dout), jnp.float32),
        grid=(S, M // tm),
        in_specs=[
            pl.BlockSpec((1, tm, Din), lambda s, m: (s, m, 0)),
            pl.BlockSpec((1, Din, Dout), lambda s, m: (s, 0, 0)),
            pl.BlockSpec((1, 1, Dout), lambda s, m: (s, 0, 0)),
        ],
        out_specs=pl.BlockSpec((1, tm, Dout), lambda s, m: (s, m, 0)),
        compiler_params=pltpu.CompilerParams(
            dimension_semantics=("parallel", "parallel")),
    )(x_stk, wT_stk, b_stk)


# --------------------------------------------------------------------------- #
# Kernel 2: multi-head attention, head-major layout, flash-style online
#           softmax over kv blocks, optional in-kernel mask bias.
# --------------------------------------------------------------------------- #
def _attn_kernel(q_ref, k_ref, v_ref, *rest, scale, masked):
    if masked:
        am_ref, kpm_ref, o_ref, m_scr, l_scr, acc_scr = rest
    else:
        o_ref, m_scr, l_scr, acc_scr = rest

    kv = pl.program_id(2)

    @pl.when(kv == 0)
    def _init():
        m_scr[...] = jnp.full_like(m_scr, -1e30)
        l_scr[...] = jnp.zeros_like(l_scr)
        acc_scr[...] = jnp.zeros_like(acc_scr)

    q = q_ref[0]                               # (H, tq, Dh) bf16
    k = k_ref[0]                               # (H, tk, Dh) bf16
    v = v_ref[0]                               # (H, tk, Dh) bf16

    # Batched QK^T over all heads — no per-head lane slicing.
    s = jnp.einsum('hqd,hkd->hqk', q, k,
                   preferred_element_type=jnp.float32) * scale   # (H, tq, tk) f32

    if masked:
        # OR of attn mask (tq,tk) and key-padding mask (1,tk); True/1 = attend
        # (torch SDPA bool-mask semantics, matching the PyTorch module).
        allowed = (am_ref[...] + kpm_ref[0]) > 0.0               # (tq, tk)
        s = jnp.where(allowed[None, :, :], s, -1e30)

    m_prev = m_scr[...]                                          # (H, tq, 1)
    m_new = jnp.maximum(m_prev, jnp.max(s, axis=-1, keepdims=True))
    alpha = jnp.exp(m_prev - m_new)
    p = jnp.exp(s - m_new)                                       # f32
    l_scr[...] = alpha * l_scr[...] + jnp.sum(p, axis=-1, keepdims=True)
    acc_scr[...] = alpha * acc_scr[...] + jnp.einsum(
        'hqk,hkd->hqd', p.astype(v.dtype), v,
        preferred_element_type=jnp.float32)
    m_scr[...] = m_new

    @pl.when(kv == pl.num_programs(2) - 1)
    def _finalize():
        inv_l = pl.reciprocal(l_scr[...], approx=True)           # EUP slot
        o_ref[0] = (acc_scr[...] * inv_l).astype(o_ref.dtype)    # one full-block store


def pallas_attention(q, k, v, amask_f, kpm_f, *, scale):
    """q,k,v: (B, H, L, Dh) bf16; amask: (Lq,Lk) or None; kpm: (B,Lk) or None."""
    B, H, Lq, Dh = q.shape
    Lk = k.shape[2]
    tq = _pick_tile(Lq, (256, 128))
    tk = _pick_tile(Lk, (512, 256, 128))
    masked = (amask_f is not None) or (kpm_f is not None)

    in_specs = [
        pl.BlockSpec((1, H, tq, Dh), lambda b, i, j: (b, 0, i, 0)),   # Q
        pl.BlockSpec((1, H, tk, Dh), lambda b, i, j: (b, 0, j, 0)),   # K
        pl.BlockSpec((1, H, tk, Dh), lambda b, i, j: (b, 0, j, 0)),   # V
    ]
    args = [q, k, v]
    if masked:
        if amask_f is None:
            amask_f = jnp.zeros((Lq, Lk), jnp.float32)
        if kpm_f is None:
            kpm_f = jnp.zeros((B, Lk), jnp.float32)
        in_specs += [
            pl.BlockSpec((tq, tk), lambda b, i, j: (i, j)),           # attn mask
            pl.BlockSpec((1, 1, tk), lambda b, i, j: (b, 0, j)),      # key padding
        ]
        args += [amask_f, kpm_f.reshape(B, 1, Lk)]

    return pl.pallas_call(
        partial(_attn_kernel, scale=scale, masked=masked),
        out_shape=jax.ShapeDtypeStruct((B, H, Lq, Dh), jnp.bfloat16),
        grid=(B, Lq // tq, Lk // tk),
        in_specs=in_specs,
        out_specs=pl.BlockSpec((1, H, tq, Dh), lambda b, i, j: (b, 0, i, 0)),
        scratch_shapes=[
            pltpu.VMEM((H, tq, 1), jnp.float32),   # running max m
            pltpu.VMEM((H, tq, 1), jnp.float32),   # running sum l
            pltpu.VMEM((H, tq, Dh), jnp.float32),  # accumulator
        ],
        compiler_params=pltpu.CompilerParams(
            dimension_semantics=("parallel", "parallel", "arbitrary")),
    )(*args)


# ------------------------------- JAX glue ---------------------------------- #
def _apply_rope(x, freqs_cos, freqs_sin):
    """Interleaved-pair RoPE. x: (L, B, H, Dh); freqs: (>=L, Dh//2). f32."""
    L = x.shape[0]
    xr = x.reshape(*x.shape[:-1], -1, 2)
    x1, x2 = xr[..., 0], xr[..., 1]
    c = freqs_cos[:L].astype(jnp.float32)[:, None, None, :]
    s = freqs_sin[:L].astype(jnp.float32)[:, None, None, :]
    r1 = x1 * c - x2 * s
    r2 = x1 * s + x2 * c
    return jnp.stack([r1, r2], axis=-1).reshape(x.shape)


def bart_attention_forward(params, query, key, value,
                           freqs_cos=None, freqs_sin=None,
                           attn_mask=None, key_padding_mask=None,
                           n_heads=4):
    # query/key/value: (L, B, d_model) float32 (PyTorch seq-first layout)
    Lq, B, D = query.shape
    Lk = key.shape[0]
    Dh = D // n_heads

    q_wT = params["q_w"].T.astype(jnp.bfloat16)
    k_wT = params["k_w"].T.astype(jnp.bfloat16)
    v_wT = params["v_w"].T.astype(jnp.bfloat16)
    o_wT = params["o_w"].T.astype(jnp.bfloat16)

    # ---- Q/K/V projection (fused 3-stack GEMM when shapes match) ----
    if query.shape == key.shape == value.shape:
        wT = jnp.stack([q_wT, k_wT, v_wT])                                   # (3, D, D)
        bs = jnp.stack([params["q_b"], params["k_b"], params["v_b"]])[:, None, :]
        x_stk = jnp.stack([query, key, value]).reshape(3, Lq * B, D)
        y = pallas_stacked_linear(x_stk, wT, bs)                             # (3, Lq*B, D)
        y = y.reshape(3, Lq, B, n_heads, Dh)
        q_p, k_p, v_p = y[0], y[1], y[2]                                     # (L, B, H, Dh)
    else:  # cross-attention with different lengths: project separately
        def _single(x, wt, b):
            L = x.shape[0]
            o = pallas_stacked_linear(x.reshape(1, L * B, D), wt[None], b[None, None, :])
            return o[0].reshape(L, B, n_heads, Dh)
        q_p = _single(query, q_wT, params["q_b"])
        k_p = _single(key, k_wT, params["k_b"])
        v_p = _single(value, v_wT, params["v_b"])

    # ---- RoPE once, in f32, outside the attention kernel ----
    if freqs_cos is not None and freqs_sin is not None:
        q_p = _apply_rope(q_p, freqs_cos, freqs_sin)
        k_p = _apply_rope(k_p, freqs_cos, freqs_sin)

    # ---- head-major layout + bf16 MXU feed for attention ----
    q_bh = q_p.transpose(1, 2, 0, 3).astype(jnp.bfloat16)   # (B, H, Lq, Dh)
    k_bh = k_p.transpose(1, 2, 0, 3).astype(jnp.bfloat16)   # (B, H, Lk, Dh)
    v_bh = v_p.transpose(1, 2, 0, 3).astype(jnp.bfloat16)

    amask_f = (jnp.asarray(attn_mask).astype(bool).astype(jnp.float32)
               if attn_mask is not None else None)
    kpm_f = (jnp.asarray(key_padding_mask).astype(bool).astype(jnp.float32)
             if key_padding_mask is not None else None)

    scale = 1.0 / math.sqrt(Dh)
    attn = pallas_attention(q_bh, k_bh, v_bh, amask_f, kpm_f, scale=scale)   # (B,H,Lq,Dh)

    # ---- output projection, then back to (Lq, B, D) ----
    attn = attn.transpose(0, 2, 1, 3).reshape(1, B * Lq, D)
    o = pallas_stacked_linear(attn, o_wT[None], params["o_b"][None, None, :])
    return o[0].reshape(B, Lq, D).transpose(1, 0, 2)


# ------------------------ pure-JAX reference (checking) --------------------- #
def _reference_forward(params, query, key, value, freqs_cos, freqs_sin,
                       attn_mask, key_padding_mask, n_heads):
    Lq, B, D = query.shape
    Lk = key.shape[0]
    Dh = D // n_heads

    def lin(x, w, b):
        return x @ w.T + b

    def rope(x, cos, sin):
        xr = x.reshape(*x.shape[:-1], -1, 2)
        x1, x2 = xr[..., 0], xr[..., 1]
        c, s = cos[None, None], sin[None, None]
        return jnp.stack([x1 * c - x2 * s, x1 * s + x2 * c], axis=-1).reshape(x.shape)

    Q = lin(query, params["q_w"], params["q_b"]).reshape(Lq, B, n_heads, Dh).transpose(1, 2, 0, 3)
    K = lin(key,   params["k_w"], params["k_b"]).reshape(Lk, B, n_heads, Dh).transpose(1, 2, 0, 3)
    V = lin(value, params["v_w"], params["v_b"]).reshape(Lk, B, n_heads, Dh).transpose(1, 2, 0, 3)
    if freqs_cos is not None and freqs_sin is not None:
        Q = rope(Q, freqs_cos[:Lq], freqs_sin[:Lq])
        K = rope(K, freqs_cos[:Lk], freqs_sin[:Lk])

    combined = None
    if key_padding_mask is not None:
        combined = jnp.asarray(key_padding_mask).astype(bool)[:, None, None, :]
    if attn_mask is not None:
        m = jnp.asarray(attn_mask).astype(bool)[None, None, :, :]
        combined = (combined | m) if combined is not None else m

    s = jnp.einsum('bhqd,bhkd->bhqk', Q, K) / math.sqrt(Dh)
    if combined is not None:
        s = jnp.where(combined, s, -1e30)
    p = jax.nn.softmax(s, axis=-1)
    o = jnp.einsum('bhqk,bhkd->bhqd', p, V)
    o = o.transpose(0, 2, 1, 3).reshape(B, Lq, D).transpose(1, 0, 2)
    return lin(o, params["o_w"], params["o_b"])


# --------------------------------- main ------------------------------------ #
if __name__ == "__main__":
    d_model, n_heads = 32, 4
    head_dim = d_model // n_heads
    L, B = 8, 2

    root = jax.random.PRNGKey(0)
    keys = jax.random.split(root, 12)

    def init_linear(kw, kb):
        w = jax.random.normal(kw, (d_model, d_model), jnp.float32) * 0.05
        b = jax.random.normal(kb, (d_model,), jnp.float32) * 0.01
        return w, b

    q_w, q_b = init_linear(keys[0], keys[1])
    k_w, k_b = init_linear(keys[2], keys[3])
    v_w, v_b = init_linear(keys[4], keys[5])
    o_w, o_b = init_linear(keys[6], keys[7])
    params = dict(q_w=q_w, q_b=q_b, k_w=k_w, k_b=k_b,
                  v_w=v_w, v_b=v_b, o_w=o_w, o_b=o_b)

    query = jax.random.normal(keys[8], (L, B, d_model), jnp.float32)
    key_in = jax.random.normal(keys[9], (L, B, d_model), jnp.float32)
    value = jax.random.normal(keys[10], (L, B, d_model), jnp.float32)

    # RoPE frequency tables: (max_len, head_dim // 2)
    max_len = 16
    inv_freq = 1.0 / (10000.0 ** (jnp.arange(0, head_dim, 2, dtype=jnp.float32)
                                  / head_dim))
    pos = jnp.arange(max_len, dtype=jnp.float32)
    freqs = pos[:, None] * inv_freq[None, :]
    freqs_cos = jnp.cos(freqs)
    freqs_sin = jnp.sin(freqs)

    # Causal mask, True = allowed (torch SDPA bool-mask convention).
    attn_mask = jnp.tril(jnp.ones((L, L), dtype=bool))

    fwd = jax.jit(partial(bart_attention_forward, n_heads=n_heads))
    out = fwd(params, query, key_in, value, freqs_cos, freqs_sin, attn_mask, None)
    out = jax.block_until_ready(out)
    assert out.shape == (L, B, d_model)

    ref = _reference_forward(params, query, key_in, value, freqs_cos, freqs_sin,
                             attn_mask, None, n_heads)
    max_err = float(jnp.max(jnp.abs(out - ref)))
    assert max_err < 2e-2, f"max abs error {max_err}"

    print("KERNEL_OK")
</pallas_src>

<mosaic_0001>
module attributes {stable_mosaic.version = 11 : i64} {
  func.func @_stacked_linear_kernel(%arg0: i32, %arg1: i32, %arg2: memref<1x16x32xf32, #tpu.memory_space<vmem>>, %arg3: memref<1x32x32xbf16, #tpu.memory_space<vmem>>, %arg4: memref<1x1x32xf32, #tpu.memory_space<vmem>>, %arg5: memref<1x16x32xf32, #tpu.memory_space<vmem>>) attributes {dimension_semantics = [#tpu.dimension_semantics<parallel>, #tpu.dimension_semantics<parallel>], iteration_bounds = array<i64: 3, 1>, scalar_prefetch = 0 : i64, scratch_operands = 0 : i64, tpu.core_type = #tpu.core_type<tc>, window_params = [{transform_indices = @transform_0, window_bounds = array<i64: 1, 16, 32>}, {transform_indices = @transform_1, window_bounds = array<i64: 1, 32, 32>}, {transform_indices = @transform_2, window_bounds = array<i64: 1, 1, 32>}, {transform_indices = @transform_3, window_bounds = array<i64: 1, 16, 32>}]} {
    %c0 = arith.constant 0 : index
    %c0_0 = arith.constant 0 : index
    %c0_1 = arith.constant 0 : index
    %0 = vector.load %arg2[%c0, %c0_0, %c0_1] : memref<1x16x32xf32, #tpu.memory_space<vmem>>, vector<1x16x32xf32>
    %1 = vector.shape_cast %0 : vector<1x16x32xf32> to vector<16x32xf32>
    %2 = arith.truncf %1 : vector<16x32xf32> to vector<16x32xbf16>
    %c0_2 = arith.constant 0 : index
    %c0_3 = arith.constant 0 : index
    %c0_4 = arith.constant 0 : index
    %3 = vector.load %arg3[%c0_2, %c0_3, %c0_4] : memref<1x32x32xbf16, #tpu.memory_space<vmem>>, vector<1x32x32xbf16>
    %4 = vector.shape_cast %3 : vector<1x32x32xbf16> to vector<32x32xbf16>
    %cst = arith.constant dense<0.000000e+00> : vector<16x32xf32>
    %5 = tpu.matmul %2, %4, %cst {dimension_numbers = #tpu.dot_dimension_numbers<[1], [0], [0], [1], [0, 0, 1, 1], [], []>} : vector<16x32xbf16>, vector<32x32xbf16>, vector<16x32xf32> -> vector<16x32xf32>
    %c0_5 = arith.constant 0 : index
    %c0_6 = arith.constant 0 : index
    %c0_7 = arith.constant 0 : index
    %6 = vector.load %arg4[%c0_5, %c0_6, %c0_7] : memref<1x1x32xf32, #tpu.memory_space<vmem>>, vector<1x1x32xf32>
    %7 = vector.shape_cast %6 : vector<1x1x32xf32> to vector<1x32xf32>
    %8 = vector.broadcast %7 : vector<1x32xf32> to vector<16x32xf32>
    %9 = arith.addf %5, %8 : vector<16x32xf32>
    %c0_8 = arith.constant 0 : index
    %c0_9 = arith.constant 0 : index
    %c0_10 = arith.constant 0 : index
    %10 = vector.load %arg5[%c0_8, %c0_9, %c0_10] : memref<1x16x32xf32, #tpu.memory_space<vmem>>, vector<1x16x32xf32>
    %11 = vector.shape_cast %10 : vector<1x16x32xf32> to vector<16x32xf32>
    %12 = vector.shape_cast %9 : vector<16x32xf32> to vector<1x16x32xf32>
    tpu.vector_store %arg5[%c0_8, %c0_9, %c0_10], %12 {strides = array<i32>} : memref<1x16x32xf32, #tpu.memory_space<vmem>>, vector<1x16x32xf32>,
    return
  }
  func.func @transform_0(%arg0: i32, %arg1: i32) -> (i32, i32, i32) {
    %c0_i32 = arith.constant 0 : i32
    %c0_i32_0 = arith.constant 0 : i32
    return %arg0, %arg1, %c0_i32 : i32, i32, i32
  }
  func.func @transform_1(%arg0: i32, %arg1: i32) -> (i32, i32, i32) {
    %c0_i32 = arith.constant 0 : i32
    %c0_i32_0 = arith.constant 0 : i32
    %c0_i32_1 = arith.constant 0 : i32
    return %arg0, %c0_i32, %c0_i32_0 : i32, i32, i32
  }
  func.func @transform_2(%arg0: i32, %arg1: i32) -> (i32, i32, i32) {
    %c0_i32 = arith.constant 0 : i32
    %c0_i32_0 = arith.constant 0 : i32
    %c0_i32_1 = arith.constant 0 : i32
    return %arg0, %c0_i32, %c0_i32_0 : i32, i32, i32
  }
  func.func @transform_3(%arg0: i32, %arg1: i32) -> (i32, i32, i32) {
    %c0_i32 = arith.constant 0 : i32
    %c0_i32_0 = arith.constant 0 : i32
    return %arg0, %arg1, %c0_i32 : i32, i32, i32
  }
}

module attributes {stable_mosaic.version = 11 : i64} {
  func.func @_attn_kernel(%arg0: i32, %arg1: i32, %arg2: i32, %arg3: memref<1x4x8x8xbf16, #tpu.memory_space<vmem>>, %arg4: memref<1x4x8x8xbf16, #tpu.memory_space<vmem>>, %arg5: memref<1x4x8x8xbf16, #tpu.memory_space<vmem>>, %arg6: memref<8x8xf32, #tpu.memory_space<vmem>>, %arg7: memref<1x1x8xf32, #tpu.memory_space<vmem>>, %arg8: memref<1x4x8x8xbf16, #tpu.memory_space<vmem>>, %arg9: memref<4x8x1xf32, #tpu.memory_space<vmem>>, %arg10: memref<4x8x1xf32, #tpu.memory_space<vmem>>, %arg11: memref<4x8x8xf32, #tpu.memory_space<vmem>>) attributes {dimension_semantics = [#tpu.dimension_semantics<parallel>, #tpu.dimension_semantics<parallel>, #tpu.dimension_semantics<arbitrary>], iteration_bounds = array<i64: 2, 1, 1>, scalar_prefetch = 0 : i64, scratch_operands = 3 : i64, tpu.core_type = #tpu.core_type<tc>, window_params = [{transform_indices = @transform_0, window_bounds = array<i64: 1, 4, 8, 8>}, {transform_indices = @transform_1, window_bounds = array<i64: 1, 4, 8, 8>}, {transform_indices = @transform_2, window_bounds = array<i64: 1, 4, 8, 8>}, {transform_indices = @transform_3, window_bounds = array<i64: 8, 8>}, {transform_indices = @transform_4, window_bounds = array<i64: 1, 1, 8>}, {transform_indices = @transform_5, window_bounds = array<i64: 1, 4, 8, 8>}]} {
    %c0_i32 = arith.constant 0 : i32
    %0 = arith.cmpi eq, %arg2, %c0_i32 : i32
    %1 = arith.extui %0 : i1 to i32
    %c0_i32_0 = arith.constant 0 : i32
    %2 = arith.cmpi ne, %1, %c0_i32_0 : i32
    scf.if %2 {
      %cst_43 = arith.constant -1.000000e+30 : f32
      %50 = vector.broadcast %cst_43 : f32 to vector<4x8x1xf32>
      %c0_44 = arith.constant 0 : index
      %c0_45 = arith.constant 0 : index
      %c0_46 = arith.constant 0 : index
      %51 = vector.load %arg9[%c0_44, %c0_45, %c0_46] : memref<4x8x1xf32, #tpu.memory_space<vmem>>, vector<4x8x1xf32>
      tpu.vector_store %arg9[%c0_44, %c0_45, %c0_46], %50 {strides = array<i32>} : memref<4x8x1xf32, #tpu.memory_space<vmem>>, vector<4x8x1xf32>,
      %cst_47 = arith.constant 0.000000e+00 : f32
      %52 = vector.broadcast %cst_47 : f32 to vector<4x8x1xf32>
      %c0_48 = arith.constant 0 : index
      %c0_49 = arith.constant 0 : index
      %c0_50 = arith.constant 0 : index
      %53 = vector.load %arg10[%c0_48, %c0_49, %c0_50] : memref<4x8x1xf32, #tpu.memory_space<vmem>>, vector<4x8x1xf32>
      tpu.vector_store %arg10[%c0_48, %c0_49, %c0_50], %52 {strides = array<i32>} : memref<4x8x1xf32, #tpu.memory_space<vmem>>, vector<4x8x1xf32>,
      %cst_51 = arith.constant 0.000000e+00 : f32
      %54 = vector.broadcast %cst_51 : f32 to vector<4x8x8xf32>
      %c0_52 = arith.constant 0 : index
      %c0_53 = arith.constant 0 : index
      %c0_54 = arith.constant 0 : index
      %55 = vector.load %arg11[%c0_52, %c0_53, %c0_54] : memref<4x8x8xf32, #tpu.memory_space<vmem>>, vector<4x8x8xf32>
      tpu.vector_store %arg11[%c0_52, %c0_53, %c0_54], %54 {strides = array<i32>} : memref<4x8x8xf32, #tpu.memory_space<vmem>>, vector<4x8x8xf32>,
    } else {
    }
    %c0 = arith.constant 0 : index
    %c0_1 = arith.constant 0 : index
    %c0_2 = arith.constant 0 : index
    %c0_3 = arith.constant 0 : index
    %3 = vector.load %arg3[%c0, %c0_1, %c0_2, %c0_3] : memref<1x4x8x8xbf16, #tpu.memory_space<vmem>>, vector<1x4x8x8xbf16>
    %4 = vector.shape_cast %3 : vector<1x4x8x8xbf16> to vector<4x8x8xbf16>
    %c0_4 = arith.constant 0 : index
    %c0_5 = arith.constant 0 : index
    %c0_6 = arith.constant 0 : index
    %c0_7 = arith.constant 0 : index
    %5 = vector.load %arg4[%c0_4, %c0_5, %c0_6, %c0_7] : memref<1x4x8x8xbf16, #tpu.memory_space<vmem>>, vector<1x4x8x8xbf16>
    %6 = vector.shape_cast %5 : vector<1x4x8x8xbf16> to vector<4x8x8xbf16>
    %c0_8 = arith.constant 0 : index
    %c0_9 = arith.constant 0 : index
    %c0_10 = arith.constant 0 : index
    %c0_11 = arith.constant 0 : index
    %7 = vector.load %arg5[%c0_8, %c0_9, %c0_10, %c0_11] : memref<1x4x8x8xbf16, #tpu.memory_space<vmem>>, vector<1x4x8x8xbf16>
    %8 = vector.shape_cast %7 : vector<1x4x8x8xbf16> to vector<4x8x8xbf16>
    "tpu.trace_start"() <{level = 10 : i32, message = "hqd,hkd->hqk"}> : () -> ()
    %cst = arith.constant dense<0.000000e+00> : vector<4x8x8xf32>
    %9 = tpu.matmul %4, %6, %cst {dimension_numbers = #tpu.dot_dimension_numbers<[2], [2], [1], [1], [0, 0, 0, 1, 1, 1], [0], [0]>} : vector<4x8x8xbf16>, vector<4x8x8xbf16>, vector<4x8x8xf32> -> vector<4x8x8xf32>
    "tpu.trace_stop"() : () -> ()
    %cst_12 = arith.constant 0.353553385 : f32
    %10 = vector.broadcast %cst_12 : f32 to vector<4x8x8xf32>
    %11 = arith.mulf %9, %10 : vector<4x8x8xf32>
    %c0_13 = arith.constant 0 : index
    %c0_14 = arith.constant 0 : index
    %12 = vector.load %arg6[%c0_13, %c0_14] : memref<8x8xf32, #tpu.memory_space<vmem>>, vector<8x8xf32>
    %c0_15 = arith.constant 0 : index
    %c0_16 = arith.constant 0 : index
    %c0_17 = arith.constant 0 : index
    %13 = vector.load %arg7[%c0_15, %c0_16, %c0_17] : memref<1x1x8xf32, #tpu.memory_space<vmem>>, vector<1x1x8xf32>
    %14 = vector.shape_cast %13 : vector<1x1x8xf32> to vector<1x8xf32>
    %15 = vector.broadcast %14 : vector<1x8xf32> to vector<8x8xf32>
    %16 = arith.addf %12, %15 : vector<8x8xf32>
    %cst_18 = arith.constant 0.000000e+00 : f32
    %17 = vector.broadcast %cst_18 : f32 to vector<8x8xf32>
    %18 = arith.cmpf ogt, %16, %17 : vector<8x8xf32>
    %19 = vector.shape_cast %18 : vector<8x8xi1> to vector<1x8x8xi1>
    %cst_19 = arith.constant -1.000000e+30 : f32
    %20 = vector.shape_cast %19 : vector<1x8x8xi1> to vector<1x8x8xi1>
    %21 = vector.broadcast %20 : vector<1x8x8xi1> to vector<4x8x8xi1>
    %22 = vector.broadcast %cst_19 : f32 to vector<4x8x8xf32>
    %23 = arith.select %21, %11, %22 : vector<4x8x8xi1>, vector<4x8x8xf32>
    %c0_20 = arith.constant 0 : index
    %c0_21 = arith.constant 0 : index
    %c0_22 = arith.constant 0 : index
    %24 = vector.load %arg9[%c0_20, %c0_21, %c0_22] : memref<4x8x1xf32, #tpu.memory_space<vmem>>, vector<4x8x1xf32>
    %cst_23 = arith.constant dense<0xFF800000> : vector<4x8xf32>
    %25 = vector.multi_reduction <maximumf>, %23, %cst_23 [2] : vector<4x8x8xf32> to vector<4x8xf32>
    %26 = vector.shape_cast %25 : vector<4x8xf32> to vector<4x8x1xf32>
    %27 = arith.maximumf %24, %26 : vector<4x8x1xf32>
    %28 = arith.subf %24, %27 : vector<4x8x1xf32>
    %29 = math.exp %28 : vector<4x8x1xf32>
    %30 = vector.broadcast %27 : vector<4x8x1xf32> to vector<4x8x8xf32>
    %31 = arith.subf %23, %30 : vector<4x8x8xf32>
    %32 = math.exp %31 : vector<4x8x8xf32>
    %c0_24 = arith.constant 0 : index
    %c0_25 = arith.constant 0 : index
    %c0_26 = arith.constant 0 : index
    %33 = vector.load %arg10[%c0_24, %c0_25, %c0_26] : memref<4x8x1xf32, #tpu.memory_space<vmem>>, vector<4x8x1xf32>
    %34 = arith.mulf %29, %33 : vector<4x8x1xf32>
    %cst_27 = arith.constant dense<0.000000e+00> : vector<4x8xf32>
    %35 = vector.multi_reduction <add>, %32, %cst_27 [2] : vector<4x8x8xf32> to vector<4x8xf32>
    %36 = vector.shape_cast %35 : vector<4x8xf32> to vector<4x8x1xf32>
    %37 = arith.addf %34, %36 : vector<4x8x1xf32>
    %c0_28 = arith.constant 0 : index
    %c0_29 = arith.constant 0 : index
    %c0_30 = arith.constant 0 : index
    %38 = vector.load %arg10[%c0_28, %c0_29, %c0_30] : memref<4x8x1xf32, #tpu.memory_space<vmem>>, vector<4x8x1xf32>
    tpu.vector_store %arg10[%c0_28, %c0_29, %c0_30], %37 {strides = array<i32>} : memref<4x8x1xf32, #tpu.memory_space<vmem>>, vector<4x8x1xf32>,
    %c0_31 = arith.constant 0 : index
    %c0_32 = arith.constant 0 : index
    %c0_33 = arith.constant 0 : index
    %39 = vector.load %arg11[%c0_31, %c0_32, %c0_33] : memref<4x8x8xf32, #tpu.memory_space<vmem>>, vector<4x8x8xf32>
    %40 = vector.broadcast %29 : vector<4x8x1xf32> to vector<4x8x8xf32>
    %41 = arith.mulf %40, %39 : vector<4x8x8xf32>
    %42 = arith.truncf %32 : vector<4x8x8xf32> to vector<4x8x8xbf16>
    "tpu.trace_start"() <{level = 10 : i32, message = "hqk,hkd->hqd"}> : () -> ()
    %cst_34 = arith.constant dense<0.000000e+00> : vector<4x8x8xf32>
    %43 = tpu.matmul %42, %8, %cst_34 {dimension_numbers = #tpu.dot_dimension_numbers<[2], [1], [1], [2], [0, 0, 0, 1, 1, 2], [0], [0]>} : vector<4x8x8xbf16>, vector<4x8x8xbf16>, vector<4x8x8xf32> -> vector<4x8x8xf32>
    "tpu.trace_stop"() : () -> ()
    %44 = arith.addf %41, %43 : vector<4x8x8xf32>
    %c0_35 = arith.constant 0 : index
    %c0_36 = arith.constant 0 : index
    %c0_37 = arith.constant 0 : index
    %45 = vector.load %arg11[%c0_35, %c0_36, %c0_37] : memref<4x8x8xf32, #tpu.memory_space<vmem>>, vector<4x8x8xf32>
    tpu.vector_store %arg11[%c0_35, %c0_36, %c0_37], %44 {strides = array<i32>} : memref<4x8x8xf32, #tpu.memory_space<vmem>>, vector<4x8x8xf32>,
    %c0_38 = arith.constant 0 : index
    %c0_39 = arith.constant 0 : index
    %c0_40 = arith.constant 0 : index
    %46 = vector.load %arg9[%c0_38, %c0_39, %c0_40] : memref<4x8x1xf32, #tpu.memory_space<vmem>>, vector<4x8x1xf32>
    tpu.vector_store %arg9[%c0_38, %c0_39, %c0_40], %27 {strides = array<i32>} : memref<4x8x1xf32, #tpu.memory_space<vmem>>, vector<4x8x1xf32>,
    %c0_i32_41 = arith.constant 0 : i32
    %47 = arith.cmpi eq, %arg2, %c0_i32_41 : i32
    %48 = arith.extui %47 : i1 to i32
    %c0_i32_42 = arith.constant 0 : i32
    %49 = arith.cmpi ne, %48, %c0_i32_42 : i32
    scf.if %49 {
      %c0_43 = arith.constant 0 : index
      %c0_44 = arith.constant 0 : index
      %c0_45 = arith.constant 0 : index
      %50 = vector.load %arg10[%c0_43, %c0_44, %c0_45] : memref<4x8x1xf32, #tpu.memory_space<vmem>>, vector<4x8x1xf32>
      %51 = tpu.reciprocal %50 {approx = true} : vector<4x8x1xf32> -> vector<4x8x1xf32>
      %c0_46 = arith.constant 0 : index
      %c0_47 = arith.constant 0 : index
      %c0_48 = arith.constant 0 : index
      %52 = vector.load %arg11[%c0_46, %c0_47, %c0_48] : memref<4x8x8xf32, #tpu.memory_space<vmem>>, vector<4x8x8xf32>
      %53 = vector.broadcast %51 : vector<4x8x1xf32> to vector<4x8x8xf32>
      %54 = arith.mulf %52, %53 : vector<4x8x8xf32>
      %55 = arith.truncf %54 : vector<4x8x8xf32> to vector<4x8x8xbf16>
      %c0_49 = arith.constant 0 : index
      %c0_50 = arith.constant 0 : index
      %c0_51 = arith.constant 0 : index
      %c0_52 = arith.constant 0 : index
      %56 = vector.load %arg8[%c0_49, %c0_50, %c0_51, %c0_52] : memref<1x4x8x8xbf16, #tpu.memory_space<vmem>>, vector<1x4x8x8xbf16>
      %57 = vector.shape_cast %56 : vector<1x4x8x8xbf16> to vector<4x8x8xbf16>
      %58 = vector.shape_cast %55 : vector<4x8x8xbf16> to vector<1x4x8x8xbf16>
      tpu.vector_store %arg8[%c0_49, %c0_50, %c0_51, %c0_52], %58 {strides = array<i32>} : memref<1x4x8x8xbf16, #tpu.memory_space<vmem>>, vector<1x4x8x8xbf16>,
    } else {
    }
    return
  }
  func.func @transform_0(%arg0: i32, %arg1: i32, %arg2: i32) -> (i32, i32, i32, i32) {
    %c0_i32 = arith.constant 0 : i32
    %c0_i32_0 = arith.constant 0 : i32
    %c0_i32_1 = arith.constant 0 : i32
    return %arg0, %c0_i32, %arg1, %c0_i32_0 : i32, i32, i32, i32
  }
  func.func @transform_1(%arg0: i32, %arg1: i32, %arg2: i32) -> (i32, i32, i32, i32) {
    %c0_i32 = arith.constant 0 : i32
    %c0_i32_0 = arith.constant 0 : i32
    %c0_i32_1 = arith.constant 0 : i32
    return %arg0, %c0_i32, %arg2, %c0_i32_0 : i32, i32, i32, i32
  }
  func.func @transform_2(%arg0: i32, %arg1: i32, %arg2: i32) -> (i32, i32, i32, i32) {
    %c0_i32 = arith.constant 0 : i32
    %c0_i32_0 = arith.constant 0 : i32
    %c0_i32_1 = arith.constant 0 : i32
    return %arg0, %c0_i32, %arg2, %c0_i32_0 : i32, i32, i32, i32
  }
  func.func @transform_3(%arg0: i32, %arg1: i32, %arg2: i32) -> (i32, i32) {
    %c0_i32 = arith.constant 0 : i32
    return %arg1, %arg2 : i32, i32
  }
  func.func @transform_4(%arg0: i32, %arg1: i32, %arg2: i32) -> (i32, i32, i32) {
    %c0_i32 = arith.constant 0 : i32
    %c0_i32_0 = arith.constant 0 : i32
    return %arg0, %c0_i32, %arg2 : i32, i32, i32
  }
  func.func @transform_5(%arg0: i32, %arg1: i32, %arg2: i32) -> (i32, i32, i32, i32) {
    %c0_i32 = arith.constant 0 : i32
    %c0_i32_0 = arith.constant 0 : i32
    %c0_i32_1 = arith.constant 0 : i32
    return %arg0, %c0_i32, %arg1, %c0_i32_0 : i32, i32, i32, i32
  }
}

module attributes {stable_mosaic.version = 11 : i64} {
  func.func @_stacked_linear_kernel(%arg0: i32, %arg1: i32, %arg2: memref<1x16x32xbf16, #tpu.memory_space<vmem>>, %arg3: memref<1x32x32xbf16, #tpu.memory_space<vmem>>, %arg4: memref<1x1x32xf32, #tpu.memory_space<vmem>>, %arg5: memref<1x16x32xf32, #tpu.memory_space<vmem>>) attributes {dimension_semantics = [#tpu.dimension_semantics<parallel>, #tpu.dimension_semantics<parallel>], iteration_bounds = array<i64: 1, 1>, scalar_prefetch = 0 : i64, scratch_operands = 0 : i64, tpu.core_type = #tpu.core_type<tc>, window_params = [{transform_indices = @transform_0, window_bounds = array<i64: 1, 16, 32>}, {transform_indices = @transform_1, window_bounds = array<i64: 1, 32, 32>}, {transform_indices = @transform_2, window_bounds = array<i64: 1, 1, 32>}, {transform_indices = @transform_3, window_bounds = array<i64: 1, 16, 32>}]} {
    %c0 = arith.constant 0 : index
    %c0_0 = arith.constant 0 : index
    %c0_1 = arith.constant 0 : index
    %0 = vector.load %arg2[%c0, %c0_0, %c0_1] : memref<1x16x32xbf16, #tpu.memory_space<vmem>>, vector<1x16x32xbf16>
    %1 = vector.shape_cast %0 : vector<1x16x32xbf16> to vector<16x32xbf16>
    %c0_2 = arith.constant 0 : index
    %c0_3 = arith.constant 0 : index
    %c0_4 = arith.constant 0 : index
    %2 = vector.load %arg3[%c0_2, %c0_3, %c0_4] : memref<1x32x32xbf16, #tpu.memory_space<vmem>>, vector<1x32x32xbf16>
    %3 = vector.shape_cast %2 : vector<1x32x32xbf16> to vector<32x32xbf16>
    %cst = arith.constant dense<0.000000e+00> : vector<16x32xf32>
    %4 = tpu.matmul %1, %3, %cst {dimension_numbers = #tpu.dot_dimension_numbers<[1], [0], [0], [1], [0, 0, 1, 1], [], []>} : vector<16x32xbf16>, vector<32x32xbf16>, vector<16x32xf32> -> vector<16x32xf32>
    %c0_5 = arith.constant 0 : index
    %c0_6 = arith.constant 0 : index
    %c0_7 = arith.constant 0 : index
    %5 = vector.load %arg4[%c0_5, %c0_6, %c0_7] : memref<1x1x32xf32, #tpu.memory_space<vmem>>, vector<1x1x32xf32>
    %6 = vector.shape_cast %5 : vector<1x1x32xf32> to vector<1x32xf32>
    %7 = vector.broadcast %6 : vector<1x32xf32> to vector<16x32xf32>
    %8 = arith.addf %4, %7 : vector<16x32xf32>
    %c0_8 = arith.constant 0 : index
    %c0_9 = arith.constant 0 : index
    %c0_10 = arith.constant 0 : index
    %9 = vector.load %arg5[%c0_8, %c0_9, %c0_10] : memref<1x16x32xf32, #tpu.memory_space<vmem>>, vector<1x16x32xf32>
    %10 = vector.shape_cast %9 : vector<1x16x32xf32> to vector<16x32xf32>
    %11 = vector.shape_cast %8 : vector<16x32xf32> to vector<1x16x32xf32>
    tpu.vector_store %arg5[%c0_8, %c0_9, %c0_10], %11 {strides = array<i32>} : memref<1x16x32xf32, #tpu.memory_space<vmem>>, vector<1x16x32xf32>,
    return
  }
  func.func @transform_0(%arg0: i32, %arg1: i32) -> (i32, i32, i32) {
    %c0_i32 = arith.constant 0 : i32
    %c0_i32_0 = arith.constant 0 : i32
    return %arg0, %arg1, %c0_i32 : i32, i32, i32
  }
  func.func @transform_1(%arg0: i32, %arg1: i32) -> (i32, i32, i32) {
    %c0_i32 = arith.constant 0 : i32
    %c0_i32_0 = arith.constant 0 : i32
    %c0_i32_1 = arith.constant 0 : i32
    return %arg0, %c0_i32, %c0_i32_0 : i32, i32, i32
  }
  func.func @transform_2(%arg0: i32, %arg1: i32) -> (i32, i32, i32) {
    %c0_i32 = arith.constant 0 : i32
    %c0_i32_0 = arith.constant 0 : i32
    %c0_i32_1 = arith.constant 0 : i32
    return %arg0, %c0_i32, %c0_i32_0 : i32, i32, i32
  }
  func.func @transform_3(%arg0: i32, %arg1: i32) -> (i32, i32, i32) {
    %c0_i32 = arith.constant 0 : i32
    %c0_i32_0 = arith.constant 0 : i32
    return %arg0, %arg1, %c0_i32 : i32, i32, i32
  }
}

</mosaic_0001>

<llo_original>
// kernel: squeeze.9
$region0: #{squeeze.9}
  %s0 = inlined_call_operand.vmem [shape: f32[1,16,32], index: 0, kind: input, shape index: {}]
  %s1 = inlined_call_operand.vmem [shape: f32[8,2,4,4,2], index: 1, kind: output, shape index: {}]
  $region1: #{squeeze.9} parent=0
    #allocation0 [shape = 'u8[262144]{0}', space=vmem, size = 0x40000, scoped, tag = 'scoped mem for output reshape']
    %v2 = vld [vmem:[%s0] sm:$0xff]
    %vm3 = vcmask 15360
    %4 = vst.msk [vmem:[#allocation0] sm:$0x1] %vm3, %v2
    %s5 = scalar_lea.vmem [#allocation0], 31
    %6 = vst.msk [vmem:[%s5] sm:$0x2] %vm3, %v2
    %s7 = scalar_lea.vmem [#allocation0], 62
    %8 = vst.msk [vmem:[%s7] sm:$0x4] %vm3, %v2
    %s9 = scalar_lea.vmem [#allocation0], 93
    %10 = vst.msk [vmem:[%s9] sm:$0x8] %vm3, %v2
    %s11 = scalar_lea.vmem [#allocation0], 124
    %12 = vst.msk [vmem:[%s11] sm:$0x10] %vm3, %v2
    %s13 = scalar_lea.vmem [#allocation0], 155
    %14 = vst.msk [vmem:[%s13] sm:$0x20] %vm3, %v2
    %s15 = scalar_lea.vmem [#allocation0], 186
    %16 = vst.msk [vmem:[%s15] sm:$0x40] %vm3, %v2
    %s17 = scalar_lea.vmem [#allocation0], 217
    %18 = vst.msk [vmem:[%s17] sm:$0x80] %vm3, %v2
    %s19 = scalar_lea.vmem %s0, 8
    %v20 = vld [vmem:[%s19] sm:$0xff]
    %vm21 = vcmask 15360
    %s22 = scalar_lea.vmem [#allocation0], 256
    %23 = vst.msk [vmem:[%s22] sm:$0x1] %vm21, %v20
    %s24 = scalar_lea.vmem [#allocation0], 287
    %25 = vst.msk [vmem:[%s24] sm:$0x2] %vm21, %v20
    %s26 = scalar_lea.vmem [#allocation0], 318
    %27 = vst.msk [vmem:[%s26] sm:$0x4] %vm21, %v20
    %s28 = scalar_lea.vmem [#allocation0], 349
    %29 = vst.msk [vmem:[%s28] sm:$0x8] %vm21, %v20
    %s30 = scalar_lea.vmem [#allocation0], 380
    %31 = vst.msk [vmem:[%s30] sm:$0x10] %vm21, %v20
    %s32 = scalar_lea.vmem [#allocation0], 411
    %33 = vst.msk [vmem:[%s32] sm:$0x20] %vm21, %v20
    %s34 = scalar_lea.vmem [#allocation0], 442
    %35 = vst.msk [vmem:[%s34] sm:$0x40] %vm21, %v20
    %s36 = scalar_lea.vmem [#allocation0], 473
    %37 = vst.msk [vmem:[%s36] sm:$0x80] %vm21, %v20
    %v38 = vld [vmem:[%s0] sm:$0xff]
    %39 = vrot.lane.b32.xlu0 %v38, 126
    %v40 = vpop.permute.xlu0 %39
    %vm41 = vcmask 15360
    %s42 = scalar_lea.vmem [#allocation0], 1
    %43 = vst.msk [vmem:[%s42] sm:$0x1] %vm41, %v40
    %s44 = scalar_lea.vmem [#allocation0], 32
    %45 = vst.msk [vmem:[%s44] sm:$0x2] %vm41, %v40
    %s46 = scalar_lea.vmem [#allocation0], 63
    %47 = vst.msk [vmem:[%s46] sm:$0x4] %vm41, %v40
    %s48 = scalar_lea.vmem [#allocation0], 94
    %49 = vst.msk [vmem:[%s48] sm:$0x8] %vm41, %v40
    %s50 = scalar_lea.vmem [#allocation0], 125
    %51 = vst.msk [vmem:[%s50] sm:$0x10] %vm41, %v40
    %s52 = scalar_lea.vmem [#allocation0], 156
    %53 = vst.msk [vmem:[%s52] sm:$0x20] %vm41, %v40
    %s54 = scalar_lea.vmem [#allocation0], 187
    %55 = vst.msk [vmem:[%s54] sm:$0x40] %vm41, %v40
    %s56 = scalar_lea.vmem [#allocation0], 218
    %57 = vst.msk [vmem:[%s56] sm:$0x80] %vm41, %v40
    %s58 = scalar_lea.vmem %s0, 8
    %v59 = vld [vmem:[%s58] sm:$0xff]
    %60 = vrot.lane.b32.xlu0 %v59, 126
    %v61 = vpop.permute.xlu0 %60
    %vm62 = vcmask 15360
    %s63 = scalar_lea.vmem [#allocation0], 257
    %64 = vst.msk [vmem:[%s63] sm:$0x1] %vm62, %v61
    %s65 = scalar_lea.vmem [#allocation0], 288
    %66 = vst.msk [vmem:[%s65] sm:$0x2] %vm62, %v61
    %s67 = scalar_lea.vmem [#allocation0], 319
    %68 = vst.msk [vmem:[%s67] sm:$0x4] %vm62, %v61
    %s69 = scalar_lea.vmem [#allocation0], 350
    %70 = vst.msk [vmem:[%s69] sm:$0x8] %vm62, %v61
    %s71 = scalar_lea.vmem [#allocation0], 381
    %72 = vst.msk [vmem:[%s71] sm:$0x10] %vm62, %v61
    %s73 = scalar_lea.vmem [#allocation0], 412
    %74 = vst.msk [vmem:[%s73] sm:$0x20] %vm62, %v61
    %s75 = scalar_lea.vmem [#allocation0], 443
    %76 = vst.msk [vmem:[%s75] sm:$0x40] %vm62, %v61
    %s77 = scalar_lea.vmem [#allocation0], 474
    %78 = vst.msk [vmem:[%s77] sm:$0x80] %vm62, %v61
    %v79 = vld [vmem:[%s0] sm:$0xff]
    %80 = vrot.lane.b32.xlu0 %v79, 124
    %v81 = vpop.permute.xlu0 %80
    %vm82 = vcmask 15360
    %s83 = scalar_lea.vmem [#allocation0], 2
    %84 = vst.msk [vmem:[%s83] sm:$0x1] %vm82, %v81
    %s85 = scalar_lea.vmem [#allocation0], 33
    %86 = vst.msk [vmem:[%s85] sm:$0x2] %vm82, %v81
    %s87 = scalar_lea.vmem [#allocation0], 64
    %88 = vst.msk [vmem:[%s87] sm:$0x4] %vm82, %v81
    %s89 = scalar_lea.vmem [#allocation0], 95
    %90 = vst.msk [vmem:[%s89] sm:$0x8] %vm82, %v81
    %s91 = scalar_lea.vmem [#allocation0], 126
    %92 = vst.msk [vmem:[%s91] sm:$0x10] %vm82, %v81
    %s93 = scalar_lea.vmem [#allocation0], 157
    %94 = vst.msk [vmem:[%s93] sm:$0x20] %vm82, %v81
    %s95 = scalar_lea.vmem [#allocation0], 188
    %96 = vst.msk [vmem:[%s95] sm:$0x40] %vm82, %v81
    %s97 = scalar_lea.vmem [#allocation0], 219
    %98 = vst.msk [vmem:[%s97] sm:$0x80] %vm82, %v81
    %s99 = scalar_lea.vmem %s0, 8
    %v100 = vld [vmem:[%s99] sm:$0xff]
    %101 = vrot.lane.b32.xlu0 %v100, 124
    %v102 = vpop.permute.xlu0 %101
    %vm103 = vcmask 15360
    %s104 = scalar_lea.vmem [#allocation0], 258
    %105 = vst.msk [vmem:[%s104] sm:$0x1] %vm103, %v102
    %s106 = scalar_lea.vmem [#allocation0], 289
    %107 = vst.msk [vmem:[%s106] sm:$0x2] %vm103, %v102
    %s108 = scalar_lea.vmem [#allocation0], 320
    %109 = vst.msk [vmem:[%s108] sm:$0x4] %vm103, %v102
    %s110 = scalar_lea.vmem [#allocation0], 351
    %111 = vst.msk [vmem:[%s110] sm:$0x8] %vm103, %v102
    %s112 = scalar_lea.vmem [#allocation0], 382
    %113 = vst.msk [vmem:[%s112] sm:$0x10] %vm103, %v102
    %s114 = scalar_lea.vmem [#allocation0], 413
    %115 = vst.msk [vmem:[%s114] sm:$0x20] %vm103, %v102
    %s116 = scalar_lea.vmem [#allocation0], 444
    %117 = vst.msk [vmem:[%s116] sm:$0x40] %vm103, %v102
    %s118 = scalar_lea.vmem [#allocation0], 475
    %119 = vst.msk [vmem:[%s118] sm:$0x80] %vm103, %v102
    %v120 = vld [vmem:[%s0] sm:$0xff]
    %121 = vrot.lane.b32.xlu0 %v120, 122
    %v122 = vpop.permute.xlu0 %121
    %vm123 = vcmask 15360
    %s124 = scalar_lea.vmem [#allocation0], 3
    %125 = vst.msk [vmem:[%s124] sm:$0x1] %vm123, %v122
    %s126 = scalar_lea.vmem [#allocation0], 34
    %127 = vst.msk [vmem:[%s126] sm:$0x2] %vm123, %v122
    %s128 = scalar_lea.vmem [#allocation0], 65
    %129 = vst.msk [vmem:[%s128] sm:$0x4] %vm123, %v122
    %s130 = scalar_lea.vmem [#allocation0], 96
    %131 = vst.msk [vmem:[%s130] sm:$0x8] %vm123, %v122
    %s132 = scalar_lea.vmem [#allocation0], 127
    %133 = vst.msk [vmem:[%s132] sm:$0x10] %vm123, %v122
    %s134 = scalar_lea.vmem [#allocation0], 158
    %135 = vst.msk [vmem:[%s134] sm:$0x20] %vm123, %v122
    %s136 = scalar_lea.vmem [#allocation0], 189
    %137 = vst.msk [vmem:[%s136] sm:$0x40] %vm123, %v122
    %s138 = scalar_lea.vmem [#allocation0], 220
    %139 = vst.msk [vmem:[%s138] sm:$0x80] %vm123, %v122
    %s140 = scalar_lea.vmem %s0, 8
    %v141 = vld [vmem:[%s140] sm:$0xff]
    %142 = vrot.lane.b32.xlu0 %v141, 122
    %v143 = vpop.permute.xlu0 %142
    %vm144 = vcmask 15360
    %s145 = scalar_lea.vmem [#allocation0], 259
    %146 = vst.msk [vmem:[%s145] sm:$0x1] %vm144, %v143
    %s147 = scalar_lea.vmem [#allocation0], 290
    %148 = vst.msk [vmem:[%s147] sm:$0x2] %vm144, %v143
    %s149 = scalar_lea.vmem [#allocation0], 321
    %150 = vst.msk [vmem:[%s149] sm:$0x4] %vm144, %v143
    %s151 = scalar_lea.vmem [#allocation0], 352
    %152 = vst.msk [vmem:[%s151] sm:$0x8] %vm144, %v143
    %s153 = scalar_lea.vmem [#allocation0], 383
    %154 = vst.msk [vmem:[%s153] sm:$0x10] %vm144, %v143
    %s155 = scalar_lea.vmem [#allocation0], 414
    %156 = vst.msk [vmem:[%s155] sm:$0x20] %vm144, %v143
    %s157 = scalar_lea.vmem [#allocation0], 445
    %158 = vst.msk [vmem:[%s157] sm:$0x40] %vm144, %v143
    %s159 = scalar_lea.vmem [#allocation0], 476
    %160 = vst.msk [vmem:[%s159] sm:$0x80] %vm144, %v143
    %v161 = vld [vmem:[%s0] sm:$0xff]
    %162 = vrot.lane.b32.xlu0 %v161, 120
    %v163 = vpop.permute.xlu0 %162
    %vm164 = vcmask 15360
    %s165 = scalar_lea.vmem [#allocation0], 8
    %166 = vst.msk [vmem:[%s165] sm:$0x1] %vm164, %v163
    %s167 = scalar_lea.vmem [#allocation0], 39
    %168 = vst.msk [vmem:[%s167] sm:$0x2] %vm164, %v163
    %s169 = scalar_lea.vmem [#allocation0], 70
    %170 = vst.msk [vmem:[%s169] sm:$0x4] %vm164, %v163
    %s171 = scalar_lea.vmem [#allocation0], 101
    %172 = vst.msk [vmem:[%s171] sm:$0x8] %vm164, %v163
    %s173 = scalar_lea.vmem [#allocation0], 132
    %174 = vst.msk [vmem:[%s173] sm:$0x10] %vm164, %v163
    %s175 = scalar_lea.vmem [#allocation0], 163
    %176 = vst.msk [vmem:[%s175] sm:$0x20] %vm164, %v163
    %s177 = scalar_lea.vmem [#allocation0], 194
    %178 = vst.msk [vmem:[%s177] sm:$0x40] %vm164, %v163
    %s179 = scalar_lea.vmem [#allocation0], 225
    %180 = vst.msk [vmem:[%s179] sm:$0x80] %vm164, %v163
    %s181 = scalar_lea.vmem %s0, 8
    %v182 = vld [vmem:[%s181] sm:$0xff]
    %183 = vrot.lane.b32.xlu0 %v182, 120
    %v184 = vpop.permute.xlu0 %183
    %vm185 = vcmask 15360
    %s186 = scalar_lea.vmem [#allocation0], 264
    %187 = vst.msk [vmem:[%s186] sm:$0x1] %vm185, %v184
    %s188 = scalar_lea.vmem [#allocation0], 295
    %189 = vst.msk [vmem:[%s188] sm:$0x2] %vm185, %v184
    %s190 = scalar_lea.vmem [#allocation0], 326
    %191 = vst.msk [vmem:[%s190] sm:$0x4] %vm185, %v184
    %s192 = scalar_lea.vmem [#allocation0], 357
    %193 = vst.msk [vmem:[%s192] sm:$0x8] %vm185, %v184
    %s194 = scalar_lea.vmem [#allocation0], 388
    %195 = vst.msk [vmem:[%s194] sm:$0x10] %vm185, %v184
    %s196 = scalar_lea.vmem [#allocation0], 419
    %197 = vst.msk [vmem:[%s196] sm:$0x20] %vm185, %v184
    %s198 = scalar_lea.vmem [#allocation0], 450
    %199 = vst.msk [vmem:[%s198] sm:$0x40] %vm185, %v184
    %s200 = scalar_lea.vmem [#allocation0], 481
    %201 = vst.msk [vmem:[%s200] sm:$0x80] %vm185, %v184
    %v202 = vld [vmem:[%s0] sm:$0xff]
    %203 = vrot.lane.b32.xlu0 %v202, 118
    %v204 = vpop.permute.xlu0 %203
    %vm205 = vcmask 15360
    %s206 = scalar_lea.vmem [#allocation0], 9
    %207 = vst.msk [vmem:[%s206] sm:$0x1] %vm205, %v204
    %s208 = scalar_lea.vmem [#allocation0], 40
    %209 = vst.msk [vmem:[%s208] sm:$0x2] %vm205, %v204
    %s210 = scalar_lea.vmem [#allocation0], 71
    %211 = vst.msk [vmem:[%s210] sm:$0x4] %vm205, %v204
    %s212 = scalar_lea.vmem [#allocation0], 102
    %213 = vst.msk [vmem:[%s212] sm:$0x8] %vm205, %v204
    %s214 = scalar_lea.vmem [#allocation0], 133
    %215 = vst.msk [vmem:[%s214] sm:$0x10] %vm205, %v204
    %s216 = scalar_lea.vmem [#allocation0], 164
    %217 = vst.msk [vmem:[%s216] sm:$0x20] %vm205, %v204
    %s218 = scalar_lea.vmem [#allocation0], 195
    %219 = vst.msk [vmem:[%s218] sm:$0x40] %vm205, %v204
    %s220 = scalar_lea.vmem [#allocation0], 226
    %221 = vst.msk [vmem:[%s220] sm:$0x80] %vm205, %v204
    %s222 = scalar_lea.vmem %s0, 8
    %v223 = vld [vmem:[%s222] sm:$0xff]
    %224 = vrot.lane.b32.xlu0 %v223, 118
    %v225 = vpop.permute.xlu0 %224
    %vm226 = vcmask 15360
    %s227 = scalar_lea.vmem [#allocation0], 265
    %228 = vst.msk [vmem:[%s227] sm:$0x1] %vm226, %v225
    %s229 = scalar_lea.vmem [#allocation0], 296
    %230 = vst.msk [vmem:[%s229] sm:$0x2] %vm226, %v225
    %s231 = scalar_lea.vmem [#allocation0], 327
    %232 = vst.msk [vmem:[%s231] sm:$0x4] %vm226, %v225
    %s233 = scalar_lea.vmem [#allocation0], 358
    %234 = vst.msk [vmem:[%s233] sm:$0x8] %vm226, %v225
    %s235 = scalar_lea.vmem [#allocation0], 389
    %236 = vst.msk [vmem:[%s235] sm:$0x10] %vm226, %v225
    %s237 = scalar_lea.vmem [#allocation0], 420
    %238 = vst.msk [vmem:[%s237] sm:$0x20] %vm226, %v225
    %s239 = scalar_lea.vmem [#allocation0], 451
    %240 = vst.msk [vmem:[%s239] sm:$0x40] %vm226, %v225
    %s241 = scalar_lea.vmem [#allocation0], 482
    %242 = vst.msk [vmem:[%s241] sm:$0x80] %vm226, %v225
    %v243 = vld [vmem:[%s0] sm:$0xff]
    %244 = vrot.lane.b32.xlu0 %v243, 116
    %v245 = vpop.permute.xlu0 %244
    %vm246 = vcmask 15360
    %s247 = scalar_lea.vmem [#allocation0], 10
    %248 = vst.msk [vmem:[%s247] sm:$0x1] %vm246, %v245
    %s249 = scalar_lea.vmem [#allocation0], 41
    %250 = vst.msk [vmem:[%s249] sm:$0x2] %vm246, %v245
    %s251 = scalar_lea.vmem [#allocation0], 72
    %252 = vst.msk [vmem:[%s251] sm:$0x4] %vm246, %v245
    %s253 = scalar_lea.vmem [#allocation0], 103
    %254 = vst.msk [vmem:[%s253] sm:$0x8] %vm246, %v245
    %s255 = scalar_lea.vmem [#allocation0], 134
    %256 = vst.msk [vmem:[%s255] sm:$0x10] %vm246, %v245
    %s257 = scalar_lea.vmem [#allocation0], 165
    %258 = vst.msk [vmem:[%s257] sm:$0x20] %vm246, %v245
    %s259 = scalar_lea.vmem [#allocation0], 196
    %260 = vst.msk [vmem:[%s259] sm:$0x40] %vm246, %v245
    %s261 = scalar_lea.vmem [#allocation0], 227
    %262 = vst.msk [vmem:[%s261] sm:$0x80] %vm246, %v245
    %s263 = scalar_lea.vmem %s0, 8
    %v264 = vld [vmem:[%s263] sm:$0xff]
    %265 = vrot.lane.b32.xlu0 %v264, 116
    %v266 = vpop.permute.xlu0 %265
    %vm267 = vcmask 15360
    %s268 = scalar_lea.vmem [#allocation0], 266
    %269 = vst.msk [vmem:[%s268] sm:$0x1] %vm267, %v266
    %s270 = scalar_lea.vmem [#allocation0], 297
    %271 = vst.msk [vmem:[%s270] sm:$0x2] %vm267, %v266
    %s272 = scalar_lea.vmem [#allocation0], 328
    %273 = vst.msk [vmem:[%s272] sm:$0x4] %vm267, %v266
    %s274 = scalar_lea.vmem [#allocation0], 359
    %275 = vst.msk [vmem:[%s274] sm:$0x8] %vm267, %v266
    %s276 = scalar_lea.vmem [#allocation0], 390
    %277 = vst.msk [vmem:[%s276] sm:$0x10] %vm267, %v266
    %s278 = scalar_lea.vmem [#allocation0], 421
    %279 = vst.msk [vmem:[%s278] sm:$0x20] %vm267, %v266
    %s280 = scalar_lea.vmem [#allocation0], 452
    %281 = vst.msk [vmem:[%s280] sm:$0x40] %vm267, %v266
    %s282 = scalar_lea.vmem [#allocation0], 483
    %283 = vst.msk [vmem:[%s282] sm:$0x80] %vm267, %v266
    %v284 = vld [vmem:[%s0] sm:$0xff]
    %285 = vrot.lane.b32.xlu0 %v284, 114
    %v286 = vpop.permute.xlu0 %285
    %vm287 = vcmask 15360
    %s288 = scalar_lea.vmem [#allocation0], 11
    %289 = vst.msk [vmem:[%s288] sm:$0x1] %vm287, %v286
    %s290 = scalar_lea.vmem [#allocation0], 42
    %291 = vst.msk [vmem:[%s290] sm:$0x2] %vm287, %v286
    %s292 = scalar_lea.vmem [#allocation0], 73
    %293 = vst.msk [vmem:[%s292] sm:$0x4] %vm287, %v286
    %s294 = scalar_lea.vmem [#allocation0], 104
    %295 = vst.msk [vmem:[%s294] sm:$0x8] %vm287, %v286
    %s296 = scalar_lea.vmem [#allocation0], 135
    %297 = vst.msk [vmem:[%s296] sm:$0x10] %vm287, %v286
    %s298 = scalar_lea.vmem [#allocation0], 166
    %299 = vst.msk [vmem:[%s298] sm:$0x20] %vm287, %v286
    %s300 = scalar_lea.vmem [#allocation0], 197
    %301 = vst.msk [vmem:[%s300] sm:$0x40] %vm287, %v286
    %s302 = scalar_lea.vmem [#allocation0], 228
    %303 = vst.msk [vmem:[%s302] sm:$0x80] %vm287, %v286
    %s304 = scalar_lea.vmem %s0, 8
    %v305 = vld [vmem:[%s304] sm:$0xff]
    %306 = vrot.lane.b32.xlu0 %v305, 114
    %v307 = vpop.permute.xlu0 %306
    %vm308 = vcmask 15360
    %s309 = scalar_lea.vmem [#allocation0], 267
    %310 = vst.msk [vmem:[%s309] sm:$0x1] %vm308, %v307
    %s311 = scalar_lea.vmem [#allocation0], 298
    %312 = vst.msk [vmem:[%s311] sm:$0x2] %vm308, %v307
    %s313 = scalar_lea.vmem [#allocation0], 329
    %314 = vst.msk [vmem:[%s313] sm:$0x4] %vm308, %v307
    %s315 = scalar_lea.vmem [#allocation0], 360
    %316 = vst.msk [vmem:[%s315] sm:$0x8] %vm308, %v307
    %s317 = scalar_lea.vmem [#allocation0], 391
    %318 = vst.msk [vmem:[%s317] sm:$0x10] %vm308, %v307
    %s319 = scalar_lea.vmem [#allocation0], 422
    %320 = vst.msk [vmem:[%s319] sm:$0x20] %vm308, %v307
    %s321 = scalar_lea.vmem [#allocation0], 453
    %322 = vst.msk [vmem:[%s321] sm:$0x40] %vm308, %v307
    %s323 = scalar_lea.vmem [#allocation0], 484
    %324 = vst.msk [vmem:[%s323] sm:$0x80] %vm308, %v307
    %v325 = vld [vmem:[%s0] sm:$0xff]
    %326 = vrot.lane.b32.xlu0 %v325, 112
    %v327 = vpop.permute.xlu0 %326
    %vm328 = vcmask 15360
    %s329 = scalar_lea.vmem [#allocation0], 16
    %330 = vst.msk [vmem:[%s329] sm:$0x1] %vm328, %v327
    %s331 = scalar_lea.vmem [#allocation0], 47
    %332 = vst.msk [vmem:[%s331] sm:$0x2] %vm328, %v327
    %s333 = scalar_lea.vmem [#allocation0], 78
    %334 = vst.msk [vmem:[%s333] sm:$0x4] %vm328, %v327
    %s335 = scalar_lea.vmem [#allocation0], 109
    %336 = vst.msk [vmem:[%s335] sm:$0x8] %vm328, %v327
    %s337 = scalar_lea.vmem [#allocation0], 140
    %338 = vst.msk [vmem:[%s337] sm:$0x10] %vm328, %v327
    %s339 = scalar_lea.vmem [#allocation0], 171
    %340 = vst.msk [vmem:[%s339] sm:$0x20] %vm328, %v327
    %s341 = scalar_lea.vmem [#allocation0], 202
    %342 = vst.msk [vmem:[%s341] sm:$0x40] %vm328, %v327
    %s343 = scalar_lea.vmem [#allocation0], 233
    %344 = vst.msk [vmem:[%s343] sm:$0x80] %vm328, %v327
    %s345 = scalar_lea.vmem %s0, 8
    %v346 = vld [vmem:[%s345] sm:$0xff]
    %347 = vrot.lane.b32.xlu0 %v346, 112
    %v348 = vpop.permute.xlu0 %347
    %vm349 = vcmask 15360
    %s350 = scalar_lea.vmem [#allocation0], 272
    %351 = vst.msk [vmem:[%s350] sm:$0x1] %vm349, %v348
    %s352 = scalar_lea.vmem [#allocation0], 303
    %353 = vst.msk [vmem:[%s352] sm:$0x2] %vm349, %v348
    %s354 = scalar_lea.vmem [#allocation0], 334
    %355 = vst.msk [vmem:[%s354] sm:$0x4] %vm349, %v348
    %s356 = scalar_lea.vmem [#allocation0], 365
    %357 = vst.msk [vmem:[%s356] sm:$0x8] %vm349, %v348
    %s358 = scalar_lea.vmem [#allocation0], 396
    %359 = vst.msk [vmem:[%s358] sm:$0x10] %vm349, %v348
    %s360 = scalar_lea.vmem [#allocation0], 427
    %361 = vst.msk [vmem:[%s360] sm:$0x20] %vm349, %v348
    %s362 = scalar_lea.vmem [#allocation0], 458
    %363 = vst.msk [vmem:[%s362] sm:$0x40] %vm349, %v348
    %s364 = scalar_lea.vmem [#allocation0], 489
    %365 = vst.msk [vmem:[%s364] sm:$0x80] %vm349, %v348
    %v366 = vld [vmem:[%s0] sm:$0xff]
    %367 = vrot.lane.b32.xlu0 %v366, 110
    %v368 = vpop.permute.xlu0 %367
    %vm369 = vcmask 15360
    %s370 = scalar_lea.vmem [#allocation0], 17
    %371 = vst.msk [vmem:[%s370] sm:$0x1] %vm369, %v368
    %s372 = scalar_lea.vmem [#allocation0], 48
    %373 = vst.msk [vmem:[%s372] sm:$0x2] %vm369, %v368
    %s374 = scalar_lea.vmem [#allocation0], 79
    %375 = vst.msk [vmem:[%s374] sm:$0x4] %vm369, %v368
    %s376 = scalar_lea.vmem [#allocation0], 110
    %377 = vst.msk [vmem:[%s376] sm:$0x8] %vm369, %v368
    %s378 = scalar_lea.vmem [#allocation0], 141
    %379 = vst.msk [vmem:[%s378] sm:$0x10] %vm369, %v368
    %s380 = scalar_lea.vmem [#allocation0], 172
    %381 = vst.msk [vmem:[%s380] sm:$0x20] %vm369, %v368
    %s382 = scalar_lea.vmem [#allocation0], 203
    %383 = vst.msk [vmem:[%s382] sm:$0x40] %vm369, %v368
    %s384 = scalar_lea.vmem [#allocation0], 234
    %385 = vst.msk [vmem:[%s384] sm:$0x80] %vm369, %v368
    %s386 = scalar_lea.vmem %s0, 8
    %v387 = vld [vmem:[%s386] sm:$0xff]
    %388 = vrot.lane.b32.xlu0 %v387, 110
    %v389 = vpop.permute.xlu0 %388
    %vm390 = vcmask 15360
    %s391 = scalar_lea.vmem [#allocation0], 273
    %392 = vst.msk [vmem:[%s391] sm:$0x1] %vm390, %v389
    %s393 = scalar_lea.vmem [#allocation0], 304
    %394 = vst.msk [vmem:[%s393] sm:$0x2] %vm390, %v389
    %s395 = scalar_lea.vmem [#allocation0], 335
    %396 = vst.msk [vmem:[%s395] sm:$0x4] %vm390, %v389
    %s397 = scalar_lea.vmem [#allocation0], 366
    %398 = vst.msk [vmem:[%s397] sm:$0x8] %vm390, %v389
    %s399 = scalar_lea.vmem [#allocation0], 397
    %400 = vst.msk [vmem:[%s399] sm:$0x10] %vm390, %v389
    %s401 = scalar_lea.vmem [#allocation0], 428
    %402 = vst.msk [vmem:[%s401] sm:$0x20] %vm390, %v389
    %s403 = scalar_lea.vmem [#allocation0], 459
    %404 = vst.msk [vmem:[%s403] sm:$0x40] %vm390, %v389
    %s405 = scalar_lea.vmem [#allocation0], 490
    %406 = vst.msk [vmem:[%s405] sm:$0x80] %vm390, %v389
    %v407 = vld [vmem:[%s0] sm:$0xff]
    %408 = vrot.lane.b32.xlu0 %v407, 108
    %v409 = vpop.permute.xlu0 %408
    %vm410 = vcmask 15360
    %s411 = scalar_lea.vmem [#allocation0], 18
    %412 = vst.msk [vmem:[%s411] sm:$0x1] %vm410, %v409
    %s413 = scalar_lea.vmem [#allocation0], 49
    %414 = vst.msk [vmem:[%s413] sm:$0x2] %vm410, %v409
    %s415 = scalar_lea.vmem [#allocation0], 80
    %416 = vst.msk [vmem:[%s415] sm:$0x4] %vm410, %v409
    %s417 = scalar_lea.vmem [#allocation0], 111
    %418 = vst.msk [vmem:[%s417] sm:$0x8] %vm410, %v409
    %s419 = scalar_lea.vmem [#allocation0], 142
    %420 = vst.msk [vmem:[%s419] sm:$0x10] %vm410, %v409
    %s421 = scalar_lea.vmem [#allocation0], 173
    %422 = vst.msk [vmem:[%s421] sm:$0x20] %vm410, %v409
    %s423 = scalar_lea.vmem [#allocation0], 204
    %424 = vst.msk [vmem:[%s423] sm:$0x40] %vm410, %v409
    %s425 = scalar_lea.vmem [#allocation0], 235
    %426 = vst.msk [vmem:[%s425] sm:$0x80] %vm410, %v409
    %s427 = scalar_lea.vmem %s0, 8
    %v428 = vld [vmem:[%s427] sm:$0xff]
    %429 = vrot.lane.b32.xlu0 %v428, 108
    %v430 = vpop.permute.xlu0 %429
    %vm431 = vcmask 15360
    %s432 = scalar_lea.vmem [#allocation0], 274
    %433 = vst.msk [vmem:[%s432] sm:$0x1] %vm431, %v430
    %s434 = scalar_lea.vmem [#allocation0], 305
    %435 = vst.msk [vmem:[%s434] sm:$0x2] %vm431, %v430
    %s436 = scalar_lea.vmem [#allocation0], 336
    %437 = vst.msk [vmem:[%s436] sm:$0x4] %vm431, %v430
    %s438 = scalar_lea.vmem [#allocation0], 367
    %439 = vst.msk [vmem:[%s438] sm:$0x8] %vm431, %v430
    %s440 = scalar_lea.vmem [#allocation0], 398
    %441 = vst.msk [vmem:[%s440] sm:$0x10] %vm431, %v430
    %s442 = scalar_lea.vmem [#allocation0], 429
    %443 = vst.msk [vmem:[%s442] sm:$0x20] %vm431, %v430
    %s444 = scalar_lea.vmem [#allocation0], 460
    %445 = vst.msk [vmem:[%s444] sm:$0x40] %vm431, %v430
    %s446 = scalar_lea.vmem [#allocation0], 491
    %447 = vst.msk [vmem:[%s446] sm:$0x80] %vm431, %v430
    %v448 = vld [vmem:[%s0] sm:$0xff]
    %449 = vrot.lane.b32.xlu0 %v448, 106
    %v450 = vpop.permute.xlu0 %449
    %vm451 = vcmask 15360
    %s452 = scalar_lea.vmem [#allocation0], 19
    %453 = vst.msk [vmem:[%s452] sm:$0x1] %vm451, %v450
    %s454 = scalar_lea.vmem [#allocation0], 50
    %455 = vst.msk [vmem:[%s454] sm:$0x2] %vm451, %v450
    %s456 = scalar_lea.vmem [#allocation0], 81
    %457 = vst.msk [vmem:[%s456] sm:$0x4] %vm451, %v450
    %s458 = scalar_lea.vmem [#allocation0], 112
    %459 = vst.msk [vmem:[%s458] sm:$0x8] %vm451, %v450
    %s460 = scalar_lea.vmem [#allocation0], 143
    %461 = vst.msk [vmem:[%s460] sm:$0x10] %vm451, %v450
    %s462 = scalar_lea.vmem [#allocation0], 174
    %463 = vst.msk [vmem:[%s462] sm:$0x20] %vm451, %v450
    %s464 = scalar_lea.vmem [#allocation0], 205
    %465 = vst.msk [vmem:[%s464] sm:$0x40] %vm451, %v450
    %s466 = scalar_lea.vmem [#allocation0], 236
    %467 = vst.msk [vmem:[%s466] sm:$0x80] %vm451, %v450
    %s468 = scalar_lea.vmem %s0, 8
    %v469 = vld [vmem:[%s468] sm:$0xff]
    %470 = vrot.lane.b32.xlu0 %v469, 106
    %v471 = vpop.permute.xlu0 %470
    %vm472 = vcmask 15360
    %s473 = scalar_lea.vmem [#allocation0], 275
    %474 = vst.msk [vmem:[%s473] sm:$0x1] %vm472, %v471
    %s475 = scalar_lea.vmem [#allocation0], 306
    %476 = vst.msk [vmem:[%s475] sm:$0x2] %vm472, %v471
    %s477 = scalar_lea.vmem [#allocation0], 337
    %478 = vst.msk [vmem:[%s477] sm:$0x4] %vm472, %v471
    %s479 = scalar_lea.vmem [#allocation0], 368
    %480 = vst.msk [vmem:[%s479] sm:$0x8] %vm472, %v471
    %s481 = scalar_lea.vmem [#allocation0], 399
    %482 = vst.msk [vmem:[%s481] sm:$0x10] %vm472, %v471
    %s483 = scalar_lea.vmem [#allocation0], 430
    %484 = vst.msk [vmem:[%s483] sm:$0x20] %vm472, %v471
    %s485 = scalar_lea.vmem [#allocation0], 461
    %486 = vst.msk [vmem:[%s485] sm:$0x40] %vm472, %v471
    %s487 = scalar_lea.vmem [#allocation0], 492
    %488 = vst.msk [vmem:[%s487] sm:$0x80] %vm472, %v471
    %v489 = vld [vmem:[%s0] sm:$0xff]
    %490 = vrot.lane.b32.xlu0 %v489, 104
    %v491 = vpop.permute.xlu0 %490
    %vm492 = vcmask 15360
    %s493 = scalar_lea.vmem [#allocation0], 24
    %494 = vst.msk [vmem:[%s493] sm:$0x1] %vm492, %v491
    %s495 = scalar_lea.vmem [#allocation0], 55
    %496 = vst.msk [vmem:[%s495] sm:$0x2] %vm492, %v491
    %s497 = scalar_lea.vmem [#allocation0], 86
    %498 = vst.msk [vmem:[%s497] sm:$0x4] %vm492, %v491
    %s499 = scalar_lea.vmem [#allocation0], 117
    %500 = vst.msk [vmem:[%s499] sm:$0x8] %vm492, %v491
    %s501 = scalar_lea.vmem [#allocation0], 148
    %502 = vst.msk [vmem:[%s501] sm:$0x10] %vm492, %v491
    %s503 = scalar_lea.vmem [#allocation0], 179
    %504 = vst.msk [vmem:[%s503] sm:$0x20] %vm492, %v491
    %s505 = scalar_lea.vmem [#allocation0], 210
    %506 = vst.msk [vmem:[%s505] sm:$0x40] %vm492, %v491
    %s507 = scalar_lea.vmem [#allocation0], 241
    %508 = vst.msk [vmem:[%s507] sm:$0x80] %vm492, %v491
    %s509 = scalar_lea.vmem %s0, 8
    %v510 = vld [vmem:[%s509] sm:$0xff]
    %511 = vrot.lane.b32.xlu0 %v510, 104
    %v512 = vpop.permute.xlu0 %511
    %vm513 = vcmask 15360
    %s514 = scalar_lea.vmem [#allocation0], 280
    %515 = vst.msk [vmem:[%s514] sm:$0x1] %vm513, %v512
    %s516 = scalar_lea.vmem [#allocation0], 311
    %517 = vst.msk [vmem:[%s516] sm:$0x2] %vm513, %v512
    %s518 = scalar_lea.vmem [#allocation0], 342
    %519 = vst.msk [vmem:[%s518] sm:$0x4] %vm513, %v512
    %s520 = scalar_lea.vmem [#allocation0], 373
    %521 = vst.msk [vmem:[%s520] sm:$0x8] %vm513, %v512
    %s522 = scalar_lea.vmem [#allocation0], 404
    %523 = vst.msk [vmem:[%s522] sm:$0x10] %vm513, %v512
    %s524 = scalar_lea.vmem [#allocation0], 435
    %525 = vst.msk [vmem:[%s524] sm:$0x20] %vm513, %v512
    %s526 = scalar_lea.vmem [#allocation0], 466
    %527 = vst.msk [vmem:[%s526] sm:$0x40] %vm513, %v512
    %s528 = scalar_lea.vmem [#allocation0], 497
    %529 = vst.msk [vmem:[%s528] sm:$0x80] %vm513, %v512
    %v530 = vld [vmem:[%s0] sm:$0xff]
    %531 = vrot.lane.b32.xlu0 %v530, 102
    %v532 = vpop.permute.xlu0 %531
    %vm533 = vcmask 15360
    %s534 = scalar_lea.vmem [#allocation0], 25
    %535 = vst.msk [vmem:[%s534] sm:$0x1] %vm533, %v532
    %s536 = scalar_lea.vmem [#allocation0], 56
    %537 = vst.msk [vmem:[%s536] sm:$0x2] %vm533, %v532
    %s538 = scalar_lea.vmem [#allocation0], 87
    %539 = vst.msk [vmem:[%s538] sm:$0x4] %vm533, %v532
    %s540 = scalar_lea.vmem [#allocation0], 118
    %541 = vst.msk [vmem:[%s540] sm:$0x8] %vm533, %v532
    %s542 = scalar_lea.vmem [#allocation0], 149
    %543 = vst.msk [vmem:[%s542] sm:$0x10] %vm533, %v532
    %s544 = scalar_lea.vmem [#allocation0], 180
    %545 = vst.msk [vmem:[%s544] sm:$0x20] %vm533, %v532
    %s546 = scalar_lea.vmem [#allocation0], 211
    %547 = vst.msk [vmem:[%s546] sm:$0x40] %vm533, %v532
    %s548 = scalar_lea.vmem [#allocation0], 242
    %549 = vst.msk [vmem:[%s548] sm:$0x80] %vm533, %v532
    %s550 = scalar_lea.vmem %s0, 8
    %v551 = vld [vmem:[%s550] sm:$0xff]
    %552 = vrot.lane.b32.xlu0 %v551, 102
    %v553 = vpop.permute.xlu0 %552
    %vm554 = vcmask 15360
    %s555 = scalar_lea.vmem [#allocation0], 281
    %556 = vst.msk [vmem:[%s555] sm:$0x1] %vm554, %v553
    %s557 = scalar_lea.vmem [#allocation0], 312
    %558 = vst.msk [vmem:[%s557] sm:$0x2] %vm554, %v553
    %s559 = scalar_lea.vmem [#allocation0], 343
    %560 = vst.msk [vmem:[%s559] sm:$0x4] %vm554, %v553
    %s561 = scalar_lea.vmem [#allocation0], 374
    %562 = vst.msk [vmem:[%s561] sm:$0x8] %vm554, %v553
    %s563 = scalar_lea.vmem [#allocation0], 405
    %564 = vst.msk [vmem:[%s563] sm:$0x10] %vm554, %v553
    %s565 = scalar_lea.vmem [#allocation0], 436
    %566 = vst.msk [vmem:[%s565] sm:$0x20] %vm554, %v553
    %s567 = scalar_lea.vmem [#allocation0], 467
    %568 = vst.msk [vmem:[%s567] sm:$0x40] %vm554, %v553
    %s569 = scalar_lea.vmem [#allocation0], 498
    %570 = vst.msk [vmem:[%s569] sm:$0x80] %vm554, %v553
    %v571 = vld [vmem:[%s0] sm:$0xff]
    %572 = vrot.lane.b32.xlu0 %v571, 100
    %v573 = vpop.permute.xlu0 %572
    %vm574 = vcmask 15360
    %s575 = scalar_lea.vmem [#allocation0], 26
    %576 = vst.msk [vmem:[%s575] sm:$0x1] %vm574, %v573
    %s577 = scalar_lea.vmem [#allocation0], 57
    %578 = vst.msk [vmem:[%s577] sm:$0x2] %vm574, %v573
    %s579 = scalar_lea.vmem [#allocation0], 88
    %580 = vst.msk [vmem:[%s579] sm:$0x4] %vm574, %v573
    %s581 = scalar_lea.vmem [#allocation0], 119
    %582 = vst.msk [vmem:[%s581] sm:$0x8] %vm574, %v573
    %s583 = scalar_lea.vmem [#allocation0], 150
    %584 = vst.msk [vmem:[%s583] sm:$0x10] %vm574, %v573
    %s585 = scalar_lea.vmem [#allocation0], 181
    %586 = vst.msk [vmem:[%s585] sm:$0x20] %vm574, %v573
    %s587 = scalar_lea.vmem [#allocation0], 212
    %588 = vst.msk [vmem:[%s587] sm:$0x40] %vm574, %v573
    %s589 = scalar_lea.vmem [#allocation0], 243
    %590 = vst.msk [vmem:[%s589] sm:$0x80] %vm574, %v573
    %s591 = scalar_lea.vmem %s0, 8
    %v592 = vld [vmem:[%s591] sm:$0xff]
    %593 = vrot.lane.b32.xlu0 %v592, 100
    %v594 = vpop.permute.xlu0 %593
    %vm595 = vcmask 15360
    %s596 = scalar_lea.vmem [#allocation0], 282
    %597 = vst.msk [vmem:[%s596] sm:$0x1] %vm595, %v594
    %s598 = scalar_lea.vmem [#allocation0], 313
    %599 = vst.msk [vmem:[%s598] sm:$0x2] %vm595, %v594
    %s600 = scalar_lea.vmem [#allocation0], 344
    %601 = vst.msk [vmem:[%s600] sm:$0x4] %vm595, %v594
    %s602 = scalar_lea.vmem [#allocation0], 375
    %603 = vst.msk [vmem:[%s602] sm:$0x8] %vm595, %v594
    %s604 = scalar_lea.vmem [#allocation0], 406
    %605 = vst.msk [vmem:[%s604] sm:$0x10] %vm595, %v594
    %s606 = scalar_lea.vmem [#allocation0], 437
    %607 = vst.msk [vmem:[%s606] sm:$0x20] %vm595, %v594
    %s608 = scalar_lea.vmem [#allocation0], 468
    %609 = vst.msk [vmem:[%s608] sm:$0x40] %vm595, %v594
    %s610 = scalar_lea.vmem [#allocation0], 499
    %611 = vst.msk [vmem:[%s610] sm:$0x80] %vm595, %v594
    %v612 = vld [vmem:[%s0] sm:$0xff]
    %613 = vrot.lane.b32.xlu0 %v612, 98
    %v614 = vpop.permute.xlu0 %613
    %vm615 = vcmask 15360
    %s616 = scalar_lea.vmem [#allocation0], 27
    %617 = vst.msk [vmem:[%s616] sm:$0x1] %vm615, %v614
    %s618 = scalar_lea.vmem [#allocation0], 58
    %619 = vst.msk [vmem:[%s618] sm:$0x2] %vm615, %v614
    %s620 = scalar_lea.vmem [#allocation0], 89
    %621 = vst.msk [vmem:[%s620] sm:$0x4] %vm615, %v614
    %s622 = scalar_lea.vmem [#allocation0], 120
    %623 = vst.msk [vmem:[%s622] sm:$0x8] %vm615, %v614
    %s624 = scalar_lea.vmem [#allocation0], 151
    %625 = vst.msk [vmem:[%s624] sm:$0x10] %vm615, %v614
    %s626 = scalar_lea.vmem [#allocation0], 182
    %627 = vst.msk [vmem:[%s626] sm:$0x20] %vm615, %v614
    %s628 = scalar_lea.vmem [#allocation0], 213
    %629 = vst.msk [vmem:[%s628] sm:$0x40] %vm615, %v614
    %s630 = scalar_lea.vmem [#allocation0], 244
    %631 = vst.msk [vmem:[%s630] sm:$0x80] %vm615, %v614
    %s632 = scalar_lea.vmem %s0, 8
    %v633 = vld [vmem:[%s632] sm:$0xff]
    %634 = vrot.lane.b32.xlu0 %v633, 98
    %v635 = vpop.permute.xlu0 %634
    %vm636 = vcmask 15360
    %s637 = scalar_lea.vmem [#allocation0], 283
    %638 = vst.msk [vmem:[%s637] sm:$0x1] %vm636, %v635
    %s639 = scalar_lea.vmem [#allocation0], 314
    %640 = vst.msk [vmem:[%s639] sm:$0x2] %vm636, %v635
    %s641 = scalar_lea.vmem [#allocation0], 345
    %642 = vst.msk [vmem:[%s641] sm:$0x4] %vm636, %v635
    %s643 = scalar_lea.vmem [#allocation0], 376
    %644 = vst.msk [vmem:[%s643] sm:$0x8] %vm636, %v635
    %s645 = scalar_lea.vmem [#allocation0], 407
    %646 = vst.msk [vmem:[%s645] sm:$0x10] %vm636, %v635
    %s647 = scalar_lea.vmem [#allocation0], 438
    %648 = vst.msk [vmem:[%s647] sm:$0x20] %vm636, %v635
    %s649 = scalar_lea.vmem [#allocation0], 469
    %650 = vst.msk [vmem:[%s649] sm:$0x40] %vm636, %v635
    %s651 = scalar_lea.vmem [#allocation0], 500
    %652 = vst.msk [vmem:[%s651] sm:$0x80] %vm636, %v635
    %s654 = sshllo.u32 0, 4
    %v656 = vld [vmem:[#allocation0] sm:%s654]
    %s657 = sshllo.u32 0, 4
    %658 = vst [vmem:[%s1] sm:%s657] %v656
    %s659 = scalar_lea.vmem [#allocation0], 8
    %v660 = vld [vmem:[%s659] sm:%s654]
    %s661 = sshllo.u32 0, 4
    %s662 = scalar_lea.vmem %s1, 4
    %663 = vst [vmem:[%s662] sm:%s661] %v660
    %s664 = scalar_lea.vmem [#allocation0], 16
    %v665 = vld [vmem:[%s664] sm:%s654]
    %s666 = sshllo.u32 0, 4
    %s667 = smul.addr 4, 2
    %s668 = scalar_lea.vmem %s1, %s667
    %669 = vst [vmem:[%s668] sm:%s666] %v665
    %s670 = scalar_lea.vmem [#allocation0], 24
    %v671 = vld [vmem:[%s670] sm:%s654]
    %s672 = sshllo.u32 0, 4
    %s673 = smul.addr 4, 3
    %s674 = scalar_lea.vmem %s1, %s673
    %675 = vst [vmem:[%s674] sm:%s672] %v671
    %s676 = scalar_lea.vmem [#allocation0], 32
    %v677 = vld [vmem:[%s676] sm:%s654]
    %s678 = sshllo.u32 0, 4
    %s679 = smul.addr 4, 4
    %s680 = scalar_lea.vmem %s1, %s679
    %681 = vst [vmem:[%s680] sm:%s678] %v677
    %s682 = scalar_lea.vmem [#allocation0], 40
    %v683 = vld [vmem:[%s682] sm:%s654]
    %s684 = sshllo.u32 0, 4
    %s685 = smul.addr 4, 5
    %s686 = scalar_lea.vmem %s1, %s685
    %687 = vst [vmem:[%s686] sm:%s684] %v683
    %s688 = scalar_lea.vmem [#allocation0], 48
    %v689 = vld [vmem:[%s688] sm:%s654]
    %s690 = sshllo.u32 0, 4
    %s691 = smul.addr 4, 6
    %s692 = scalar_lea.vmem %s1, %s691
    %693 = vst [vmem:[%s692] sm:%s690] %v689
    %s694 = scalar_lea.vmem [#allocation0], 56
    %v695 = vld [vmem:[%s694] sm:%s654]
    %s696 = sshllo.u32 0, 4
    %s697 = smul.addr 4, 7
    %s698 = scalar_lea.vmem %s1, %s697
    %699 = vst [vmem:[%s698] sm:%s696] %v695
    %s700 = scalar_lea.vmem [#allocation0], 64
    %v701 = vld [vmem:[%s700] sm:%s654]
    %s702 = sshllo.u32 0, 4
    %s703 = smul.addr 4, 8
    %s704 = scalar_lea.vmem %s1, %s703
    %705 = vst [vmem:[%s704] sm:%s702] %v701
    %s706 = scalar_lea.vmem [#allocation0], 72
    %v707 = vld [vmem:[%s706] sm:%s654]
    %s708 = sshllo.u32 0, 4
    %s709 = smul.addr 4, 9
    %s710 = scalar_lea.vmem %s1, %s709
    %711 = vst [vmem:[%s710] sm:%s708] %v707
    %s712 = scalar_lea.vmem [#allocation0], 80
    %v713 = vld [vmem:[%s712] sm:%s654]
    %s714 = sshllo.u32 0, 4
    %s715 = smul.addr 4, 10
    %s716 = scalar_lea.vmem %s1, %s715
    %717 = vst [vmem:[%s716] sm:%s714] %v713
    %s718 = scalar_lea.vmem [#allocation0], 88
    %v719 = vld [vmem:[%s718] sm:%s654]
    %s720 = sshllo.u32 0, 4
    %s721 = smul.addr 4, 11
    %s722 = scalar_lea.vmem %s1, %s721
    %723 = vst [vmem:[%s722] sm:%s720] %v719
    %s724 = scalar_lea.vmem [#allocation0], 96
    %v725 = vld [vmem:[%s724] sm:%s654]
    %s726 = sshllo.u32 0, 4
    %s727 = smul.addr 4, 12
    %s728 = scalar_lea.vmem %s1, %s727
    %729 = vst [vmem:[%s728] sm:%s726] %v725
    %s730 = scalar_lea.vmem [#allocation0], 104
    %v731 = vld [vmem:[%s730] sm:%s654]
    %s732 = sshllo.u32 0, 4
    %s733 = smul.addr 4, 13
    %s734 = scalar_lea.vmem %s1, %s733
    %735 = vst [vmem:[%s734] sm:%s732] %v731
    %s736 = scalar_lea.vmem [#allocation0], 112
    %v737 = vld [vmem:[%s736] sm:%s654]
    %s738 = sshllo.u32 0, 4
    %s739 = smul.addr 4, 14
    %s740 = scalar_lea.vmem %s1, %s739
    %741 = vst [vmem:[%s740] sm:%s738] %v737
    %s742 = scalar_lea.vmem [#allocation0], 120
    %v743 = vld [vmem:[%s742] sm:%s654]
    %s744 = sshllo.u32 0, 4
    %s745 = smul.addr 4, 15
    %s746 = scalar_lea.vmem %s1, %s745
    %747 = vst [vmem:[%s746] sm:%s744] %v743
    %s748 = scalar_lea.vmem [#allocation0], 128
    %v749 = vld [vmem:[%s748] sm:%s654]
    %s750 = sshllo.u32 0, 4
    %s751 = smul.addr 4, 16
    %s752 = scalar_lea.vmem %s1, %s751
    %753 = vst [vmem:[%s752] sm:%s750] %v749
    %s754 = scalar_lea.vmem [#allocation0], 136
    %v755 = vld [vmem:[%s754] sm:%s654]
    %s756 = sshllo.u32 0, 4
    %s757 = smul.addr 4, 17
    %s758 = scalar_lea.vmem %s1, %s757
    %759 = vst [vmem:[%s758] sm:%s756] %v755
    %s760 = scalar_lea.vmem [#allocation0], 144
    %v761 = vld [vmem:[%s760] sm:%s654]
    %s762 = sshllo.u32 0, 4
    %s763 = smul.addr 4, 18
    %s764 = scalar_lea.vmem %s1, %s763
    %765 = vst [vmem:[%s764] sm:%s762] %v761
    %s766 = scalar_lea.vmem [#allocation0], 152
    %v767 = vld [vmem:[%s766] sm:%s654]
    %s768 = sshllo.u32 0, 4
    %s769 = smul.addr 4, 19
    %s770 = scalar_lea.vmem %s1, %s769
    %771 = vst [vmem:[%s770] sm:%s768] %v767
    %s772 = scalar_lea.vmem [#allocation0], 160
    %v773 = vld [vmem:[%s772] sm:%s654]
    %s774 = sshllo.u32 0, 4
    %s775 = smul.addr 4, 20
    %s776 = scalar_lea.vmem %s1, %s775
    %777 = vst [vmem:[%s776] sm:%s774] %v773
    %s778 = scalar_lea.vmem [#allocation0], 168
    %v779 = vld [vmem:[%s778] sm:%s654]
    %s780 = sshllo.u32 0, 4
    %s781 = smul.addr 4, 21
    %s782 = scalar_lea.vmem %s1, %s781
    %783 = vst [vmem:[%s782] sm:%s780] %v779
    %s784 = scalar_lea.vmem [#allocation0], 176
    %v785 = vld [vmem:[%s784] sm:%s654]
    %s786 = sshllo.u32 0, 4
    %s787 = smul.addr 4, 22
    %s788 = scalar_lea.vmem %s1, %s787
    %789 = vst [vmem:[%s788] sm:%s786] %v785
    %s790 = scalar_lea.vmem [#allocation0], 184
    %v791 = vld [vmem:[%s790] sm:%s654]
    %s792 = sshllo.u32 0, 4
    %s793 = smul.addr 4, 23
    %s794 = scalar_lea.vmem %s1, %s793
    %795 = vst [vmem:[%s794] sm:%s792] %v791
    %s796 = scalar_lea.vmem [#allocation0], 192
    %v797 = vld [vmem:[%s796] sm:%s654]
    %s798 = sshllo.u32 0, 4
    %s799 = smul.addr 4, 24
    %s800 = scalar_lea.vmem %s1, %s799
    %801 = vst [vmem:[%s800] sm:%s798] %v797
    %s802 = scalar_lea.vmem [#allocation0], 200
    %v803 = vld [vmem:[%s802] sm:%s654]
    %s804 = sshllo.u32 0, 4
    %s805 = smul.addr 4, 25
    %s806 = scalar_lea.vmem %s1, %s805
    %807 = vst [vmem:[%s806] sm:%s804] %v803
    %s808 = scalar_lea.vmem [#allocation0], 208
    %v809 = vld [vmem:[%s808] sm:%s654]
    %s810 = sshllo.u32 0, 4
    %s811 = smul.addr 4, 26
    %s812 = scalar_lea.vmem %s1, %s811
    %813 = vst [vmem:[%s812] sm:%s810] %v809
    %s814 = scalar_lea.vmem [#allocation0], 216
    %v815 = vld [vmem:[%s814] sm:%s654]
    %s816 = sshllo.u32 0, 4
    %s817 = smul.addr 4, 27
    %s818 = scalar_lea.vmem %s1, %s817
    %819 = vst [vmem:[%s818] sm:%s816] %v815
    %s820 = scalar_lea.vmem [#allocation0], 224
    %v821 = vld [vmem:[%s820] sm:%s654]
    %s822 = sshllo.u32 0, 4
    %s823 = smul.addr 4, 28
    %s824 = scalar_lea.vmem %s1, %s823
    %825 = vst [vmem:[%s824] sm:%s822] %v821
    %s826 = scalar_lea.vmem [#allocation0], 232
    %v827 = vld [vmem:[%s826] sm:%s654]
    %s828 = sshllo.u32 0, 4
    %s829 = smul.addr 4, 29
    %s830 = scalar_lea.vmem %s1, %s829
    %831 = vst [vmem:[%s830] sm:%s828] %v827
    %s832 = scalar_lea.vmem [#allocation0], 240
    %v833 = vld [vmem:[%s832] sm:%s654]
    %s834 = sshllo.u32 0, 4
    %s835 = smul.addr 4, 30
    %s836 = scalar_lea.vmem %s1, %s835
    %837 = vst [vmem:[%s836] sm:%s834] %v833
    %s838 = scalar_lea.vmem [#allocation0], 248
    %v839 = vld [vmem:[%s838] sm:%s654]
    %s840 = sshllo.u32 0, 4
    %s841 = smul.addr 4, 31
    %s842 = scalar_lea.vmem %s1, %s841
    %843 = vst [vmem:[%s842] sm:%s840] %v839
    %s844 = scalar_lea.vmem [#allocation0], 256
    %v845 = vld [vmem:[%s844] sm:%s654]
    %s846 = sshllo.u32 0, 4
    %s847 = smul.addr 4, 32
    %s848 = scalar_lea.vmem %s1, %s847
    %849 = vst [vmem:[%s848] sm:%s846] %v845
    %s850 = scalar_lea.vmem [#allocation0], 264
    %v851 = vld [vmem:[%s850] sm:%s654]
    %s852 = sshllo.u32 0, 4
    %s853 = smul.addr 4, 33
    %s854 = scalar_lea.vmem %s1, %s853
    %855 = vst [vmem:[%s854] sm:%s852] %v851
    %s856 = scalar_lea.vmem [#allocation0], 272
    %v857 = vld [vmem:[%s856] sm:%s654]
    %s858 = sshllo.u32 0, 4
    %s859 = smul.addr 4, 34
    %s860 = scalar_lea.vmem %s1, %s859
    %861 = vst [vmem:[%s860] sm:%s858] %v857
    %s862 = scalar_lea.vmem [#allocation0], 280
    %v863 = vld [vmem:[%s862] sm:%s654]
    %s864 = sshllo.u32 0, 4
    %s865 = smul.addr 4, 35
    %s866 = scalar_lea.vmem %s1, %s865
    %867 = vst [vmem:[%s866] sm:%s864] %v863
    %s868 = scalar_lea.vmem [#allocation0], 288
    %v869 = vld [vmem:[%s868] sm:%s654]
    %s870 = sshllo.u32 0, 4
    %s871 = smul.addr 4, 36
    %s872 = scalar_lea.vmem %s1, %s871
    %873 = vst [vmem:[%s872] sm:%s870] %v869
    %s874 = scalar_lea.vmem [#allocation0], 296
    %v875 = vld [vmem:[%s874] sm:%s654]
    %s876 = sshllo.u32 0, 4
    %s877 = smul.addr 4, 37
    %s878 = scalar_lea.vmem %s1, %s877
    %879 = vst [vmem:[%s878] sm:%s876] %v875
    %s880 = scalar_lea.vmem [#allocation0], 304
    %v881 = vld [vmem:[%s880] sm:%s654]
    %s882 = sshllo.u32 0, 4
    %s883 = smul.addr 4, 38
    %s884 = scalar_lea.vmem %s1, %s883
    %885 = vst [vmem:[%s884] sm:%s882] %v881
    %s886 = scalar_lea.vmem [#allocation0], 312
    %v887 = vld [vmem:[%s886] sm:%s654]
    %s888 = sshllo.u32 0, 4
    %s889 = smul.addr 4, 39
    %s890 = scalar_lea.vmem %s1, %s889
    %891 = vst [vmem:[%s890] sm:%s888] %v887
    %s892 = scalar_lea.vmem [#allocation0], 320
    %v893 = vld [vmem:[%s892] sm:%s654]
    %s894 = sshllo.u32 0, 4
    %s895 = smul.addr 4, 40
    %s896 = scalar_lea.vmem %s1, %s895
    %897 = vst [vmem:[%s896] sm:%s894] %v893
    %s898 = scalar_lea.vmem [#allocation0], 328
    %v899 = vld [vmem:[%s898] sm:%s654]
    %s900 = sshllo.u32 0, 4
    %s901 = smul.addr 4, 41
    %s902 = scalar_lea.vmem %s1, %s901
    %903 = vst [vmem:[%s902] sm:%s900] %v899
    %s904 = scalar_lea.vmem [#allocation0], 336
    %v905 = vld [vmem:[%s904] sm:%s654]
    %s906 = sshllo.u32 0, 4
    %s907 = smul.addr 4, 42
    %s908 = scalar_lea.vmem %s1, %s907
    %909 = vst [vmem:[%s908] sm:%s906] %v905
    %s910 = scalar_lea.vmem [#allocation0], 344
    %v911 = vld [vmem:[%s910] sm:%s654]
    %s912 = sshllo.u32 0, 4
    %s913 = smul.addr 4, 43
    %s914 = scalar_lea.vmem %s1, %s913
    %915 = vst [vmem:[%s914] sm:%s912] %v911
    %s916 = scalar_lea.vmem [#allocation0], 352
    %v917 = vld [vmem:[%s916] sm:%s654]
    %s918 = sshllo.u32 0, 4
    %s919 = smul.addr 4, 44
    %s920 = scalar_lea.vmem %s1, %s919
    %921 = vst [vmem:[%s920] sm:%s918] %v917
    %s922 = scalar_lea.vmem [#allocation0], 360
    %v923 = vld [vmem:[%s922] sm:%s654]
    %s924 = sshllo.u32 0, 4
    %s925 = smul.addr 4, 45
    %s926 = scalar_lea.vmem %s1, %s925
    %927 = vst [vmem:[%s926] sm:%s924] %v923
    %s928 = scalar_lea.vmem [#allocation0], 368
    %v929 = vld [vmem:[%s928] sm:%s654]
    %s930 = sshllo.u32 0, 4
    %s931 = smul.addr 4, 46
    %s932 = scalar_lea.vmem %s1, %s931
    %933 = vst [vmem:[%s932] sm:%s930] %v929
    %s934 = scalar_lea.vmem [#allocation0], 376
    %v935 = vld [vmem:[%s934] sm:%s654]
    %s936 = sshllo.u32 0, 4
    %s937 = smul.addr 4, 47
    %s938 = scalar_lea.vmem %s1, %s937
    %939 = vst [vmem:[%s938] sm:%s936] %v935
    %s940 = scalar_lea.vmem [#allocation0], 384
    %v941 = vld [vmem:[%s940] sm:%s654]
    %s942 = sshllo.u32 0, 4
    %s943 = smul.addr 4, 48
    %s944 = scalar_lea.vmem %s1, %s943
    %945 = vst [vmem:[%s944] sm:%s942] %v941
    %s946 = scalar_lea.vmem [#allocation0], 392
    %v947 = vld [vmem:[%s946] sm:%s654]
    %s948 = sshllo.u32 0, 4
    %s949 = smul.addr 4, 49
    %s950 = scalar_lea.vmem %s1, %s949
    %951 = vst [vmem:[%s950] sm:%s948] %v947
    %s952 = scalar_lea.vmem [#allocation0], 400
    %v953 = vld [vmem:[%s952] sm:%s654]
    %s954 = sshllo.u32 0, 4
    %s955 = smul.addr 4, 50
    %s956 = scalar_lea.vmem %s1, %s955
    %957 = vst [vmem:[%s956] sm:%s954] %v953
    %s958 = scalar_lea.vmem [#allocation0], 408
    %v959 = vld [vmem:[%s958] sm:%s654]
    %s960 = sshllo.u32 0, 4
    %s961 = smul.addr 4, 51
    %s962 = scalar_lea.vmem %s1, %s961
    %963 = vst [vmem:[%s962] sm:%s960] %v959
    %s964 = scalar_lea.vmem [#allocation0], 416
    %v965 = vld [vmem:[%s964] sm:%s654]
    %s966 = sshllo.u32 0, 4
    %s967 = smul.addr 4, 52
    %s968 = scalar_lea.vmem %s1, %s967
    %969 = vst [vmem:[%s968] sm:%s966] %v965
    %s970 = scalar_lea.vmem [#allocation0], 424
    %v971 = vld [vmem:[%s970] sm:%s654]
    %s972 = sshllo.u32 0, 4
    %s973 = smul.addr 4, 53
    %s974 = scalar_lea.vmem %s1, %s973
    %975 = vst [vmem:[%s974] sm:%s972] %v971
    %s976 = scalar_lea.vmem [#allocation0], 432
    %v977 = vld [vmem:[%s976] sm:%s654]
    %s978 = sshllo.u32 0, 4
    %s979 = smul.addr 4, 54
    %s980 = scalar_lea.vmem %s1, %s979
    %981 = vst [vmem:[%s980] sm:%s978] %v977
    %s982 = scalar_lea.vmem [#allocation0], 440
    %v983 = vld [vmem:[%s982] sm:%s654]
    %s984 = sshllo.u32 0, 4
    %s985 = smul.addr 4, 55
    %s986 = scalar_lea.vmem %s1, %s985
    %987 = vst [vmem:[%s986] sm:%s984] %v983
    %s988 = scalar_lea.vmem [#allocation0], 448
    %v989 = vld [vmem:[%s988] sm:%s654]
    %s990 = sshllo.u32 0, 4
    %s991 = smul.addr 4, 56
    %s992 = scalar_lea.vmem %s1, %s991
    %993 = vst [vmem:[%s992] sm:%s990] %v989
    %s994 = scalar_lea.vmem [#allocation0], 456
    %v995 = vld [vmem:[%s994] sm:%s654]
    %s996 = sshllo.u32 0, 4
    %s997 = smul.addr 4, 57
    %s998 = scalar_lea.vmem %s1, %s997
    %999 = vst [vmem:[%s998] sm:%s996] %v995
    %s1000 = scalar_lea.vmem [#allocation0], 464
    %v1001 = vld [vmem:[%s1000] sm:%s654]
    %s1002 = sshllo.u32 0, 4
    %s1003 = smul.addr 4, 58
    %s1004 = scalar_lea.vmem %s1, %s1003
    %1005 = vst [vmem:[%s1004] sm:%s1002] %v1001
    %s1006 = scalar_lea.vmem [#allocation0], 472
    %v1007 = vld [vmem:[%s1006] sm:%s654]
    %s1008 = sshllo.u32 0, 4
    %s1009 = smul.addr 4, 59
    %s1010 = scalar_lea.vmem %s1, %s1009
    %1011 = vst [vmem:[%s1010] sm:%s1008] %v1007
    %s1012 = scalar_lea.vmem [#allocation0], 480
    %v1013 = vld [vmem:[%s1012] sm:%s654]
    %s1014 = sshllo.u32 0, 4
    %s1015 = smul.addr 4, 60
    %s1016 = scalar_lea.vmem %s1, %s1015
    %1017 = vst [vmem:[%s1016] sm:%s1014] %v1013
    %s1018 = scalar_lea.vmem [#allocation0], 488
    %v1019 = vld [vmem:[%s1018] sm:%s654]
    %s1020 = sshllo.u32 0, 4
    %s1021 = smul.addr 4, 61
    %s1022 = scalar_lea.vmem %s1, %s1021
    %1023 = vst [vmem:[%s1022] sm:%s1020] %v1019
    %s1024 = scalar_lea.vmem [#allocation0], 496
    %v1025 = vld [vmem:[%s1024] sm:%s654]
    %s1026 = sshllo.u32 0, 4
    %s1027 = smul.addr 4, 62
    %s1028 = scalar_lea.vmem %s1, %s1027
    %1029 = vst [vmem:[%s1028] sm:%s1026] %v1025
    %s1030 = scalar_lea.vmem [#allocation0], 504
    %v1031 = vld [vmem:[%s1030] sm:%s654]
    %s1032 = sshllo.u32 0, 4
    %s1033 = smul.addr 4, 63
    %s1034 = scalar_lea.vmem %s1, %s1033
    %1035 = vst [vmem:[%s1034] sm:%s1032] %v1031

// kernel: bart_attention_forward.3
$region0: #{bart_attention_forward.3}
  #allocation0 [shape = 'u32[]', space=smem, size = 0x4, offset = 0x4, fixed_abs, tag = 'smem constant byte address 0x4 - core index']
  #allocation1 [shape = 'u32[144,128]{1,0:T(1,128)}', space=vmem, size = 0x12000, scoped, tag = 'internal scratch']
  %s0 = inlined_call_operand.vmem [shape: f32[3,16,32], index: 0, kind: input, shape index: {}]
  %s1 = inlined_call_operand.vmem [shape: bf16[3,32,32], index: 1, kind: input, shape index: {}]
  %s2 = inlined_call_operand.vmem [shape: f32[3,1,32], index: 2, kind: input, shape index: {}]
  %s3 = inlined_call_operand.vmem [shape: f32[3,16,32], index: 3, kind: output, shape index: {}]
  %s4 = sld [smem:[#allocation0]]
  $region45: #{bart_attention_forward.3} parent=0
    _
  %s6 = ssub.s32 1, %s4
  %s7 = scalar_select 0, %s6, %s4
  loop: start=0, step=1, limit=5
  $region2: #{bart_attention_forward.3} parent=0 // loop_pre_header
    _
  $region3: #{bart_attention_forward.3} parent=0 // loop_header
    %s9 = sphi 0, %s13
    %p10 = scmp.ge.s32.totalorder %s9, 5
    %s16 = sphi 0, %s28
    %s17 = sphi 0, %s24
    %s18 = sphi 0, %s16
    %s19 = sphi 0, %s17
    %s20 = sphi 0, %s18
    %s21 = sphi 0, %s19
    %s33 = sphi 0, %s35
    %s36 = sphi 0, %s33
    %s37 = sphi 0, %s36
    %s53 = sphi 0, %s37
    %s59 = sphi 0, %s61
    %s62 = sphi 0, %s59
    %s63 = sphi 0, %s62
    %s79 = sphi 0, %s63
    %s85 = sphi 0, %s87
    %s88 = sphi 0, %s85
    %s89 = sphi 0, %s88
    %s105 = sphi 0, %s89
    %s113 = sphi 0, %s115
    %s116 = sphi 0, %s113
    %s117 = sphi 0, %s116
    %s133 = sphi 0, %s117
  $region4: #{bart_attention_forward.3} parent=0 // loop_header_branch
    %12 = sbr.rel (%p10) target = $region8
  $region5: #{bart_attention_forward.3} parent=0 // loop_body
    %s14 = ssub.s32 %s9, 1
    %s15 = ssub.s32 %s9, 2
    %s22 = sadd.s32 1, %s17
    %p23 = scmp.ge.s32.totalorder %s22, 1
    %s24 = scalar_select %p23, 0, %s22
    %s25 = sadd.s32 1, %s16
    %s26 = scalar_select %p23, %s25, %s16
    %p27 = scmp.ge.s32.totalorder %s26, 3
    %s28 = scalar_select %p27, 0, %s26
    %s29 = ssub.s32 %s16, %s28
    %s30 = ssub.s32 %s17, %s24
    %s31 = sor.u32 %s29, %s30
    %p32 = scmp.eq.s32.totalorder %s31, 0
    %s34 = sadd.s32 %s33, 1
    %s35 = scalar_select %p32, %s33, %s34
    %p38 = pneg %p32
    %p39 = scmp.eq.s32.totalorder %s9, 2
    %p40 = por %p38, %p39
    %p41 = scmp.ne.s32.totalorder %s33, %s36
    %p42 = scmp.eq.s32.totalorder %s9, 0
    %p43 = por %p41, %p42
    %p44 = scmp.ne.s32.totalorder %s33, %s36
    %p45 = scmp.eq.s32.totalorder %s14, 2
    %p46 = por %p44, %p45
    %p47 = scmp.ne.s32.totalorder %s36, %s37
    %p48 = scmp.eq.s32.totalorder %s14, 0
    %p49 = por %p47, %p48
    %p50 = scmp.ne.s32.totalorder %s36, %s37
    %p51 = scmp.eq.s32.totalorder %s15, 2
    %p52 = por %p50, %p51
    %p54 = scmp.ne.s32.totalorder %s37, %s53
    %p55 = scmp.eq.s32.totalorder %s15, 0
    %p56 = por %p54, %p55
    %s57 = ssub.s32 %s16, %s28
    %p58 = scmp.eq.s32.totalorder %s57, 0
    %s60 = sadd.s32 %s59, 1
    %s61 = scalar_select %p58, %s59, %s60
    %p64 = pneg %p58
    %p65 = scmp.eq.s32.totalorder %s9, 2
    %p66 = por %p64, %p65
    %p67 = scmp.ne.s32.totalorder %s59, %s62
    %p68 = scmp.eq.s32.totalorder %s9, 0
    %p69 = por %p67, %p68
    %p70 = scmp.ne.s32.totalorder %s59, %s62
    %p71 = scmp.eq.s32.totalorder %s14, 2
    %p72 = por %p70, %p71
    %p73 = scmp.ne.s32.totalorder %s62, %s63
    %p74 = scmp.eq.s32.totalorder %s14, 0
    %p75 = por %p73, %p74
    %p76 = scmp.ne.s32.totalorder %s62, %s63
    %p77 = scmp.eq.s32.totalorder %s15, 2
    %p78 = por %p76, %p77
    %p80 = scmp.ne.s32.totalorder %s63, %s79
    %p81 = scmp.eq.s32.totalorder %s15, 0
    %p82 = por %p80, %p81
    %s83 = ssub.s32 %s16, %s28
    %p84 = scmp.eq.s32.totalorder %s83, 0
    %s86 = sadd.s32 %s85, 1
    %s87 = scalar_select %p84, %s85, %s86
    %p90 = pneg %p84
    %p91 = scmp.eq.s32.totalorder %s9, 2
    %p92 = por %p90, %p91
    %p93 = scmp.ne.s32.totalorder %s85, %s88
    %p94 = scmp.eq.s32.totalorder %s9, 0
    %p95 = por %p93, %p94
    %p96 = scmp.ne.s32.totalorder %s85, %s88
    %p97 = scmp.eq.s32.totalorder %s14, 2
    %p98 = por %p96, %p97
    %p99 = scmp.ne.s32.totalorder %s88, %s89
    %p100 = scmp.eq.s32.totalorder %s14, 0
    %p101 = por %p99, %p100
    %p102 = scmp.ne.s32.totalorder %s88, %s89
    %p103 = scmp.eq.s32.totalorder %s15, 2
    %p104 = por %p102, %p103
    %p106 = scmp.ne.s32.totalorder %s89, %s105
    %p107 = scmp.eq.s32.totalorder %s15, 0
    %p108 = por %p106, %p107
    %s109 = ssub.s32 %s16, %s28
    %s110 = ssub.s32 %s17, %s24
    %s111 = sor.u32 %s109, %s110
    %p112 = scmp.eq.s32.totalorder %s111, 0
    %s114 = sadd.s32 %s113, 1
    %s115 = scalar_select %p112, %s113, %s114
    %p118 = pneg %p112
    %p119 = scmp.eq.s32.totalorder %s9, 2
    %p120 = por %p118, %p119
    %p121 = scmp.ne.s32.totalorder %s113, %s116
    %p122 = scmp.eq.s32.totalorder %s9, 0
    %p123 = por %p121, %p122
    %p124 = scmp.ne.s32.totalorder %s113, %s116
    %p125 = scmp.eq.s32.totalorder %s14, 2
    %p126 = por %p124, %p125
    %p127 = scmp.ne.s32.totalorder %s116, %s117
    %p128 = scmp.eq.s32.totalorder %s14, 0
    %p129 = por %p127, %p128
    %p130 = scmp.ne.s32.totalorder %s116, %s117
    %p131 = scmp.eq.s32.totalorder %s15, 2
    %p132 = por %p130, %p131
    %p134 = scmp.ne.s32.totalorder %s117, %s133
    %p135 = scmp.eq.s32.totalorder %s15, 0
    %p136 = por %p134, %p135
    %p137 = scmp.le.s32.totalorder 1, %s9
    %p138 = scmp.lt.s32.totalorder %s9, 4
    %p139 = pnand %p137, %p138
    %p140 = pneg %p139
    // Predicated region
    $region9: #{bart_attention_forward.3} parent=5 // pred_check
      _
    $region10: #{bart_attention_forward.3} parent=5 // pred_check_branch
      %142 = sbr.rel (%p139) target = $region12
    $region11: #{bart_attention_forward.3} parent=5 // pred_region
      %s143 = ssub.s32 %s9, 1
    $region12: #{bart_attention_forward.3} parent=5 // pred_fallthru
      _
    %p144 = scmp.lt.s32.totalorder %s9, 3
    // Predicated region
    $region13: #{bart_attention_forward.3} parent=5 // pred_check
      %p145 = pneg %p144
    $region14: #{bart_attention_forward.3} parent=5 // pred_check_branch
      %147 = sbr.rel (%p145) target = $region16
    $region15: #{bart_attention_forward.3} parent=5 // pred_region
      // Predicated region
      $region17: #{bart_attention_forward.3} parent=15 // pred_check
        %p148 = pneg %p43
      $region18: #{bart_attention_forward.3} parent=15 // pred_check_branch
        %150 = sbr.rel (%p148) target = $region20
      $region19: #{bart_attention_forward.3} parent=15 // pred_region
        %s151 = smul.u32 2, %s17
        %p152 = scmp.lt.s32.totalorder %s16, 2
        %s153 = scalar_select %p152, %s16, 2
        %p154 = scmp.lt.s32.totalorder %s151, 1
        %s155 = scalar_select %p154, %s151, 1
        %s156 = smul.addr %s153, 2
        %s157 = sadd.s32 %s155, %s156
        %s158 = smul.addr %s157, 8
        %s159 = scalar_lea.vmem %s0, %s158
        %s160 = smul.u32 2, %s17
      $region20: #{bart_attention_forward.3} parent=15 // pred_fallthru
        _
      // Predicated region
      $region21: #{bart_attention_forward.3} parent=15 // pred_check
        %p161 = pneg %p69
      $region22: #{bart_attention_forward.3} parent=15 // pred_check_branch
        %163 = sbr.rel (%p161) target = $region24
      $region23: #{bart_attention_forward.3} parent=15 // pred_region
        %p164 = scmp.lt.s32.totalorder %s16, 2
        %s165 = scalar_select %p164, %s16, 2
        %s166 = smul.addr %s165, 4
        %s167 = smul.addr %s166, 4
        %s168 = scalar_lea.vmem %s1, %s167
      $region24: #{bart_attention_forward.3} parent=15 // pred_fallthru
        _
      // Predicated region
      $region25: #{bart_attention_forward.3} parent=15 // pred_check
        %p169 = pneg %p95
      $region26: #{bart_attention_forward.3} parent=15 // pred_check_branch
        %171 = sbr.rel (%p169) target = $region28
      $region27: #{bart_attention_forward.3} parent=15 // pred_region
        %p172 = scmp.lt.s32.totalorder %s16, 2
        %s173 = scalar_select %p172, %s16, 2
        %s174 = scalar_lea.vmem %s2, %s173
      $region28: #{bart_attention_forward.3} parent=15 // pred_fallthru
        _
    $region16: #{bart_attention_forward.3} parent=5 // pred_fallthru
      _
    %p175 = scmp.le.s32.totalorder 1, %s9
    %p176 = scmp.lt.s32.totalorder %s9, 4
    %p177 = pnand %p175, %p176
    %p178 = pneg %p177
    // Predicated region
    $region29: #{bart_attention_forward.3} parent=5 // pred_check
      _
    $region30: #{bart_attention_forward.3} parent=5 // pred_check_branch
      %180 = sbr.rel (%p177) target = $region32
    $region31: #{bart_attention_forward.3} parent=5 // pred_region
      %s181 = ssub.s32 %s9, 1
      %s182 = smul.u32 2, %s19
      %p183 = scmp.lt.s32.totalorder %s18, 2
      %s184 = scalar_select %p183, %s18, 2
      %p185 = scmp.lt.s32.totalorder %s182, 1
      %s186 = scalar_select %p185, %s182, 1
      %s187 = smul.addr %s184, 2
      %s188 = sadd.s32 %s186, %s187
      %s189 = smul.addr %s188, 8
      %s190 = scalar_lea.vmem %s0, %s189
      %p191 = pneg %p49
      %p192 = pneg %p46
      %p193 = scmp.lt.s32.totalorder %s18, 2
      %s194 = scalar_select %p193, %s18, 2
      %s195 = smul.addr %s194, 4
      %s196 = smul.addr %s195, 4
      %s197 = scalar_lea.vmem %s1, %s196
      %p198 = pneg %p75
      %p199 = pneg %p72
      %p200 = scmp.lt.s32.totalorder %s18, 2
      %s201 = scalar_select %p200, %s18, 2
      %s202 = scalar_lea.vmem %s2, %s201
      %p203 = pneg %p101
      %p204 = pneg %p98
      %p205 = pneg %p129
      %p206 = pneg %p126
      %s207 = smul.u32 2, %s19
      %p208 = scmp.lt.s32.totalorder %s18, 2
      %s209 = scalar_select %p208, %s18, 2
      %p210 = scmp.lt.s32.totalorder %s207, 1
      %s211 = scalar_select %p210, %s207, 1
      %s212 = smul.addr %s209, 2
      %s213 = sadd.s32 %s211, %s212
      %s214 = smul.addr %s213, 8
      %s215 = scalar_lea.vmem %s3, %s214
      %s216 = smul.u32 2, %s19
      %p217 = scmp.lt.s32.totalorder %s18, 2
      %s218 = scalar_select %p217, %s18, 2
      %p219 = scmp.lt.s32.totalorder %s216, 1
      %s220 = scalar_select %p219, %s216, 1
      %s221 = smul.addr %s218, 2
      %s222 = sadd.s32 %s220, %s221
      %s223 = smul.addr %s222, 8
      %s224 = scalar_lea.vmem %s0, %s223
      %s225 = smul.u32 2, %s19
      %p226 = scmp.lt.s32.totalorder %s18, 2
      %s227 = scalar_select %p226, %s18, 2
      %s228 = smul.addr %s227, 4
      %s229 = smul.addr %s228, 4
      %s230 = scalar_lea.vmem %s1, %s229
      %p231 = scmp.lt.s32.totalorder %s18, 2
      %s232 = scalar_select %p231, %s18, 2
      %s233 = scalar_lea.vmem %s2, %s232
      %s234 = smul.u32 2, %s19
      %p235 = scmp.lt.s32.totalorder %s18, 2
      %s236 = scalar_select %p235, %s18, 2
      %p237 = scmp.lt.s32.totalorder %s234, 1
      %s238 = scalar_select %p237, %s234, 1
      %s239 = smul.addr %s236, 2
      %s240 = sadd.s32 %s238, %s239
      %s241 = smul.addr %s240, 8
      %s242 = scalar_lea.vmem %s3, %s241
      %s243 = smul.u32 2, %s19
      %v245 = vld [vmem:[%s224] sm:$0xff]
      %v246 = vld [vmem:[%s224 + $0x8] sm:$0xff]
      %v247 = vpack.c.bf16 %v246, %v245
      %v248 = vld [vmem:[%s230] sm:$0xf]
      %v249 = vld [vmem:[%s230 + $0x4] sm:$0xf]
      %v250 = vld [vmem:[%s230 + $0x8] sm:$0xf]
      %v251 = vld [vmem:[%s230 + $0xc] sm:$0xf]
      %v252 = vld [vmem:[%s233] sm:$0x1]
      %v254 = vlaneseq
      %v255 = vshrl.u32 %v254, 7
      %v256 = vsub.s32 0, %v255
      %v257 = vrot.slane %v252, %v256
      %v263 = vunpack.c.l.b16 %v248
      %v264 = vunpack.c.l.b16 %v249
      %v265 = vunpack.c.l.b16 %v250
      %v266 = vunpack.c.l.b16 %v251
      %v267 = vpack.c.b16 %v264, %v263
      %v268 = vpack.c.b16 %v266, %v265
      %vm271 = vcmask 261120
      %v273 = vsel %vm271, %v247, 0
      %275 = vmatprep.subr.bf16.mxu0 0
      %276 = vmatpush1.bf16.msra.mxu0 %v267
      %277 = vmatprep.subr.bf16.mxu0 0
      %278 = vmatpush1.bf16.msra.mxu0 %v268
      %279 = vmatprep.subr.bf16.mxu0 0
      %280 = vmatpush1.bf16.msra.mxu0 0
      %281 = vmatprep.subr.bf16.mxu0 0
      %282 = vmatpush1.bf16.msra.mxu0 0
      %283 = vmatprep.subr.bf16.mxu0 0
      %284 = vmatpush1.bf16.msra.mxu0 0
      %285 = vmatprep.subr.bf16.mxu0 0
      %286 = vmatpush1.bf16.msra.mxu0 0
      %287 = vmatprep.subr.bf16.mxu0 0
      %288 = vmatpush1.bf16.msra.mxu0 0
      %289 = vmatprep.subr.bf16.mxu0 0
      %290 = vmatpush1.bf16.msra.mxu0 0
      %291 = vmatprep.subr.bf16.mxu0 0
      %292 = vmatpush1.bf16.msra.mxu0 0
      %293 = vmatprep.subr.bf16.mxu0 0
      %294 = vmatpush1.bf16.msra.mxu0 0
      %295 = vmatprep.subr.bf16.mxu0 0
      %296 = vmatpush1.bf16.msra.mxu0 0
      %297 = vmatprep.subr.bf16.mxu0 0
      %298 = vmatpush1.bf16.msra.mxu0 0
      %299 = vmatprep.subr.bf16.mxu0 0
      %300 = vmatpush1.bf16.msra.mxu0 0
      %301 = vmatprep.subr.bf16.mxu0 0
      %302 = vmatpush1.bf16.msra.mxu0 0
      %303 = vmatprep.subr.bf16.mxu0 0
      %304 = vmatpush1.bf16.msra.mxu0 0
      %305 = vmatprep.subr.bf16.mxu0 0
      %306 = vmatpush1.bf16.msra.mxu0 0
      %307 = vmatprep.mubr.bf16.mxu0 0
      %308 = vmatmul.mubr.bf16.gmra.mrb[0].mxu0 %v273
      %v309 = vpop.f32.mrb[0].mxu0
      %v310 = vadd.f32 %v257, %v309
      %v311 = vpop.f32.mrb[0].mxu0
      %v312 = vpop.f32.mrb[0].mxu0
      %v313 = vadd.f32 %v257, %v312
      %v314 = vpop.f32.mrb[0].mxu0
      %315 = vdwg.mxu0
      %316 = vst.msk [vmem:[%s242] sm:$0xff] %vm271, %v310
      %317 = vst.msk [vmem:[%s242 + $0x8] sm:$0xff] %vm271, %v313
      %s318 = smul.u32 2, %s19
      %p319 = scmp.lt.s32.totalorder %s18, 2
      %s320 = scalar_select %p319, %s18, 2
      %p321 = scmp.lt.s32.totalorder %s318, 1
      %s322 = scalar_select %p321, %s318, 1
      %s323 = smul.addr %s320, 2
      %s324 = sadd.s32 %s322, %s323
      %s325 = smul.addr %s324, 8
      %s326 = scalar_lea.vmem %s3, %s325
      // Predicated region
      $region33: #{bart_attention_forward.3} parent=31 // pred_check
        %p327 = pneg %p126
      $region34: #{bart_attention_forward.3} parent=31 // pred_check_branch
        %329 = sbr.rel (%p327) target = $region36
      $region35: #{bart_attention_forward.3} parent=31 // pred_region
        %s330 = smul.u32 2, %s19
      $region36: #{bart_attention_forward.3} parent=31 // pred_fallthru
        _
    $region32: #{bart_attention_forward.3} parent=5 // pred_fallthru
      _
    %p331 = scmp.le.s32.totalorder 2, %s9
    // Predicated region
    $region37: #{bart_attention_forward.3} parent=5 // pred_check
      %p332 = pneg %p331
    $region38: #{bart_attention_forward.3} parent=5 // pred_check_branch
      %334 = sbr.rel (%p332) target = $region40
    $region39: #{bart_attention_forward.3} parent=5 // pred_region
      %s335 = ssub.s32 %s9, 2
      // Predicated region
      $region41: #{bart_attention_forward.3} parent=39 // pred_check
        %p336 = pneg %p132
      $region42: #{bart_attention_forward.3} parent=39 // pred_check_branch
        %338 = sbr.rel (%p336) target = $region44
      $region43: #{bart_attention_forward.3} parent=39 // pred_region
        %s339 = smul.u32 2, %s21
        %p340 = scmp.lt.s32.totalorder %s20, 2
        %s341 = scalar_select %p340, %s20, 2
        %p342 = scmp.lt.s32.totalorder %s339, 1
        %s343 = scalar_select %p342, %s339, 1
        %s344 = smul.addr %s341, 2
        %s345 = sadd.s32 %s343, %s344
        %s346 = smul.addr %s345, 8
        %s347 = scalar_lea.vmem %s3, %s346
      $region44: #{bart_attention_forward.3} parent=39 // pred_fallthru
        _
    $region40: #{bart_attention_forward.3} parent=5 // pred_fallthru
      _
  $region6: #{bart_attention_forward.3} parent=0 // loop_footer
    %s13 = sadd.s32 1, %s9
  $region7: #{bart_attention_forward.3} parent=0 // loop_footer_branch
    %8 = sbr.rel target = $region3
  $region8: #{bart_attention_forward.3} parent=0 // loop_exit
    _

// kernel: bart_attention_forward.5
$region0: #{bart_attention_forward.5}
  #allocation0 [shape = 'u32[]', space=smem, size = 0x4, offset = 0x4, fixed_abs, tag = 'smem constant byte address 0x4 - core index']
  #allocation1 [shape = 'u32[144,128]{1,0:T(1,128)}', space=vmem, size = 0x12000, scoped, tag = 'internal scratch']
  %s0 = inlined_call_operand.vmem [shape: bf16[1,16,32], index: 0, kind: input, shape index: {}]
  %s1 = inlined_call_operand.vmem [shape: bf16[1,32,32], index: 1, kind: input, shape index: {}]
  %s2 = inlined_call_operand.vmem [shape: f32[1,1,32], index: 2, kind: input, shape index: {}]
  %s3 = inlined_call_operand.vmem [shape: f32[1,16,32], index: 3, kind: output, shape index: {}]
  %s4 = sld [smem:[#allocation0]]
  $region22: #{bart_attention_forward.5} parent=0
    _
  %s6 = ssub.s32 1, %s4
  %s7 = scalar_select 0, %s6, %s4
  // Predicated region
  $region2: #{bart_attention_forward.5} parent=0 // pred_check
    _
  $region3: #{bart_attention_forward.5} parent=0 // pred_check_branch
    %9 = sbr.rel (0) target = $region5
  $region4: #{bart_attention_forward.5} parent=0 // pred_region
    _
  $region5: #{bart_attention_forward.5} parent=0 // pred_fallthru
    _
  // Predicated region
  $region6: #{bart_attention_forward.5} parent=0 // pred_check
    _
  $region7: #{bart_attention_forward.5} parent=0 // pred_check_branch
    %11 = sbr.rel (0) target = $region9
  $region8: #{bart_attention_forward.5} parent=0 // pred_region
    _
  $region9: #{bart_attention_forward.5} parent=0 // pred_fallthru
    _
  // Predicated region
  $region10: #{bart_attention_forward.5} parent=0 // pred_check
    _
  $region11: #{bart_attention_forward.5} parent=0 // pred_check_branch
    %13 = sbr.rel (0) target = $region13
  $region12: #{bart_attention_forward.5} parent=0 // pred_region
    _
  $region13: #{bart_attention_forward.5} parent=0 // pred_fallthru
    _
  %v15 = vld [vmem:[%s0] sm:$0xf]
  %v16 = vld [vmem:[%s0 + $0x4] sm:$0xf]
  %v17 = vld [vmem:[%s1] sm:$0xf]
  %v18 = vld [vmem:[%s1 + $0x4] sm:$0xf]
  %v19 = vld [vmem:[%s1 + $0x8] sm:$0xf]
  %v20 = vld [vmem:[%s1 + $0xc] sm:$0xf]
  %v21 = vld [vmem:[%s2] sm:$0x1]
  %v23 = vlaneseq
  %v24 = vshrl.u32 %v23, 7
  %v25 = vsub.s32 0, %v24
  %v26 = vrot.slane %v21, %v25
  %v30 = vunpack.c.l.b16 %v15
  %v31 = vunpack.c.l.b16 %v16
  %v32 = vpack.c.b16 %v31, %v30
  %v37 = vunpack.c.l.b16 %v17
  %v38 = vunpack.c.l.b16 %v18
  %v39 = vunpack.c.l.b16 %v19
  %v40 = vunpack.c.l.b16 %v20
  %v41 = vpack.c.b16 %v38, %v37
  %v42 = vpack.c.b16 %v40, %v39
  %vm45 = vcmask 261120
  %v47 = vsel %vm45, %v32, 0
  %49 = vmatprep.subr.bf16.mxu0 0
  %50 = vmatpush1.bf16.msra.mxu0 %v41
  %51 = vmatprep.subr.bf16.mxu0 0
  %52 = vmatpush1.bf16.msra.mxu0 %v42
  %53 = vmatprep.subr.bf16.mxu0 0
  %54 = vmatpush1.bf16.msra.mxu0 0
  %55 = vmatprep.subr.bf16.mxu0 0
  %56 = vmatpush1.bf16.msra.mxu0 0
  %57 = vmatprep.subr.bf16.mxu0 0
  %58 = vmatpush1.bf16.msra.mxu0 0
  %59 = vmatprep.subr.bf16.mxu0 0
  %60 = vmatpush1.bf16.msra.mxu0 0
  %61 = vmatprep.subr.bf16.mxu0 0
  %62 = vmatpush1.bf16.msra.mxu0 0
  %63 = vmatprep.subr.bf16.mxu0 0
  %64 = vmatpush1.bf16.msra.mxu0 0
  %65 = vmatprep.subr.bf16.mxu0 0
  %66 = vmatpush1.bf16.msra.mxu0 0
  %67 = vmatprep.subr.bf16.mxu0 0
  %68 = vmatpush1.bf16.msra.mxu0 0
  %69 = vmatprep.subr.bf16.mxu0 0
  %70 = vmatpush1.bf16.msra.mxu0 0
  %71 = vmatprep.subr.bf16.mxu0 0
  %72 = vmatpush1.bf16.msra.mxu0 0
  %73 = vmatprep.subr.bf16.mxu0 0
  %74 = vmatpush1.bf16.msra.mxu0 0
  %75 = vmatprep.subr.bf16.mxu0 0
  %76 = vmatpush1.bf16.msra.mxu0 0
  %77 = vmatprep.subr.bf16.mxu0 0
  %78 = vmatpush1.bf16.msra.mxu0 0
  %79 = vmatprep.subr.bf16.mxu0 0
  %80 = vmatpush1.bf16.msra.mxu0 0
  %81 = vmatprep.mubr.bf16.mxu0 0
  %82 = vmatmul.mubr.bf16.gmra.mrb[0].mxu0 %v47
  %v83 = vpop.f32.mrb[0].mxu0
  %v84 = vadd.f32 %v26, %v83
  %v85 = vpop.f32.mrb[0].mxu0
  %v86 = vpop.f32.mrb[0].mxu0
  %v87 = vadd.f32 %v26, %v86
  %v88 = vpop.f32.mrb[0].mxu0
  %89 = vdwg.mxu0
  %90 = vst.msk [vmem:[%s3] sm:$0xff] %vm45, %v84
  %91 = vst.msk [vmem:[%s3 + $0x8] sm:$0xff] %vm45, %v87
  // Predicated region
  $region14: #{bart_attention_forward.5} parent=0 // pred_check
    _
  $region15: #{bart_attention_forward.5} parent=0 // pred_check_branch
    %93 = sbr.rel (0) target = $region17
  $region16: #{bart_attention_forward.5} parent=0 // pred_region
    _
  $region17: #{bart_attention_forward.5} parent=0 // pred_fallthru
    _
  // Predicated region
  $region18: #{bart_attention_forward.5} parent=0 // pred_check
    _
  $region19: #{bart_attention_forward.5} parent=0 // pred_check_branch
    %95 = sbr.rel (0) target = $region21
  $region20: #{bart_attention_forward.5} parent=0 // pred_region
    _
  $region21: #{bart_attention_forward.5} parent=0 // pred_fallthru
    _

// kernel: bart_attention_forward.4
$region0: #{bart_attention_forward.4}
  #allocation0 [shape = 'u32[]', space=smem, size = 0x4, offset = 0x4, fixed_abs, tag = 'smem constant byte address 0x4 - core index']
  #allocation1 [shape = 'u32[144,128]{1,0:T(1,128)}', space=vmem, size = 0x12000, scoped, tag = 'internal scratch']
  #allocation2 [shape = 'f32[4,8,1]{2,1,0:T(8,128)}', space=vmem, size = 0x4000, scoped, tag = 'scratch operand']
  #allocation3 [shape = 'f32[4,8,1]{2,1,0:T(8,128)}', space=vmem, size = 0x4000, scoped, tag = 'scratch operand']
  #allocation4 [shape = 'f32[4,8,8]{2,1,0:T(8,128)}', space=vmem, size = 0x4000, scoped, tag = 'scratch operand']
  %s0 = inlined_call_operand.vmem [shape: bf16[2,4,8,8], index: 0, kind: input, shape index: {}]
  %s1 = inlined_call_operand.vmem [shape: bf16[2,4,8,8], index: 1, kind: input, shape index: {}]
  %s2 = inlined_call_operand.vmem [shape: bf16[2,4,8,8], index: 2, kind: input, shape index: {}]
  %s3 = inlined_call_operand.vmem [shape: f32[8,8], index: 3, kind: input, shape index: {}]
  %s4 = inlined_call_operand.vmem [shape: f32[2,1,8], index: 4, kind: input, shape index: {}]
  %s5 = inlined_call_operand.vmem [shape: bf16[2,4,8,8], index: 5, kind: output, shape index: {}]
  %s6 = sld [smem:[#allocation0]]
  $region61: #{bart_attention_forward.4} parent=0
    _
  %s8 = ssub.s32 1, %s6
  %s9 = scalar_select 0, %s8, %s6
  loop: start=0, step=1, limit=4
  $region2: #{bart_attention_forward.4} parent=0 // loop_pre_header
    _
  $region3: #{bart_attention_forward.4} parent=0 // loop_header
    %s11 = sphi 0, %s15
    %p12 = scmp.ge.s32.totalorder %s11, 4
    %s18 = sphi 0, %s37
    %s19 = sphi 0, %s33
    %s20 = sphi 0, %s29
    %s21 = sphi 0, %s18
    %s22 = sphi 0, %s19
    %s23 = sphi 0, %s20
    %s24 = sphi 0, %s21
    %s25 = sphi 0, %s22
    %s26 = sphi 0, %s23
    %s42 = sphi 0, %s44
    %s45 = sphi 0, %s42
    %s46 = sphi 0, %s45
    %s62 = sphi 0, %s46
    %s70 = sphi 0, %s72
    %s73 = sphi 0, %s70
    %s74 = sphi 0, %s73
    %s90 = sphi 0, %s74
    %s98 = sphi 0, %s100
    %s101 = sphi 0, %s98
    %s102 = sphi 0, %s101
    %s118 = sphi 0, %s102
    %s126 = sphi 0, %s128
    %s129 = sphi 0, %s126
    %s130 = sphi 0, %s129
    %s146 = sphi 0, %s130
    %s154 = sphi 0, %s156
    %s157 = sphi 0, %s154
    %s158 = sphi 0, %s157
    %s174 = sphi 0, %s158
    %s182 = sphi 0, %s184
    %s185 = sphi 0, %s182
    %s186 = sphi 0, %s185
    %s202 = sphi 0, %s186
  $region4: #{bart_attention_forward.4} parent=0 // loop_header_branch
    %14 = sbr.rel (%p12) target = $region8
  $region5: #{bart_attention_forward.4} parent=0 // loop_body
    %s16 = ssub.s32 %s11, 1
    %s17 = ssub.s32 %s11, 2
    %s27 = sadd.s32 1, %s20
    %p28 = scmp.ge.s32.totalorder %s27, 1
    %s29 = scalar_select %p28, 0, %s27
    %s30 = sadd.s32 1, %s19
    %s31 = scalar_select %p28, %s30, %s19
    %p32 = scmp.ge.s32.totalorder %s31, 1
    %s33 = scalar_select %p32, 0, %s31
    %s34 = sadd.s32 1, %s18
    %s35 = scalar_select %p32, %s34, %s18
    %p36 = scmp.ge.s32.totalorder %s35, 2
    %s37 = scalar_select %p36, 0, %s35
    %s38 = ssub.s32 %s18, %s37
    %s39 = ssub.s32 %s19, %s33
    %s40 = sor.u32 %s38, %s39
    %p41 = scmp.eq.s32.totalorder %s40, 0
    %s43 = sadd.s32 %s42, 1
    %s44 = scalar_select %p41, %s42, %s43
    %p47 = pneg %p41
    %p48 = scmp.eq.s32.totalorder %s11, 1
    %p49 = por %p47, %p48
    %p50 = scmp.ne.s32.totalorder %s42, %s45
    %p51 = scmp.eq.s32.totalorder %s11, 0
    %p52 = por %p50, %p51
    %p53 = scmp.ne.s32.totalorder %s42, %s45
    %p54 = scmp.eq.s32.totalorder %s16, 1
    %p55 = por %p53, %p54
    %p56 = scmp.ne.s32.totalorder %s45, %s46
    %p57 = scmp.eq.s32.totalorder %s16, 0
    %p58 = por %p56, %p57
    %p59 = scmp.ne.s32.totalorder %s45, %s46
    %p60 = scmp.eq.s32.totalorder %s17, 1
    %p61 = por %p59, %p60
    %p63 = scmp.ne.s32.totalorder %s46, %s62
    %p64 = scmp.eq.s32.totalorder %s17, 0
    %p65 = por %p63, %p64
    %s66 = ssub.s32 %s18, %s37
    %s67 = ssub.s32 %s20, %s29
    %s68 = sor.u32 %s66, %s67
    %p69 = scmp.eq.s32.totalorder %s68, 0
    %s71 = sadd.s32 %s70, 1
    %s72 = scalar_select %p69, %s70, %s71
    %p75 = pneg %p69
    %p76 = scmp.eq.s32.totalorder %s11, 1
    %p77 = por %p75, %p76
    %p78 = scmp.ne.s32.totalorder %s70, %s73
    %p79 = scmp.eq.s32.totalorder %s11, 0
    %p80 = por %p78, %p79
    %p81 = scmp.ne.s32.totalorder %s70, %s73
    %p82 = scmp.eq.s32.totalorder %s16, 1
    %p83 = por %p81, %p82
    %p84 = scmp.ne.s32.totalorder %s73, %s74
    %p85 = scmp.eq.s32.totalorder %s16, 0
    %p86 = por %p84, %p85
    %p87 = scmp.ne.s32.totalorder %s73, %s74
    %p88 = scmp.eq.s32.totalorder %s17, 1
    %p89 = por %p87, %p88
    %p91 = scmp.ne.s32.totalorder %s74, %s90
    %p92 = scmp.eq.s32.totalorder %s17, 0
    %p93 = por %p91, %p92
    %s94 = ssub.s32 %s18, %s37
    %s95 = ssub.s32 %s20, %s29
    %s96 = sor.u32 %s94, %s95
    %p97 = scmp.eq.s32.totalorder %s96, 0
    %s99 = sadd.s32 %s98, 1
    %s100 = scalar_select %p97, %s98, %s99
    %p103 = pneg %p97
    %p104 = scmp.eq.s32.totalorder %s11, 1
    %p105 = por %p103, %p104
    %p106 = scmp.ne.s32.totalorder %s98, %s101
    %p107 = scmp.eq.s32.totalorder %s11, 0
    %p108 = por %p106, %p107
    %p109 = scmp.ne.s32.totalorder %s98, %s101
    %p110 = scmp.eq.s32.totalorder %s16, 1
    %p111 = por %p109, %p110
    %p112 = scmp.ne.s32.totalorder %s101, %s102
    %p113 = scmp.eq.s32.totalorder %s16, 0
    %p114 = por %p112, %p113
    %p115 = scmp.ne.s32.totalorder %s101, %s102
    %p116 = scmp.eq.s32.totalorder %s17, 1
    %p117 = por %p115, %p116
    %p119 = scmp.ne.s32.totalorder %s102, %s118
    %p120 = scmp.eq.s32.totalorder %s17, 0
    %p121 = por %p119, %p120
    %s122 = ssub.s32 %s19, %s33
    %s123 = ssub.s32 %s20, %s29
    %s124 = sor.u32 %s122, %s123
    %p125 = scmp.eq.s32.totalorder %s124, 0
    %s127 = sadd.s32 %s126, 1
    %s128 = scalar_select %p125, %s126, %s127
    %p131 = pneg %p125
    %p132 = scmp.eq.s32.totalorder %s11, 1
    %p133 = por %p131, %p132
    %p134 = scmp.ne.s32.totalorder %s126, %s129
    %p135 = scmp.eq.s32.totalorder %s11, 0
    %p136 = por %p134, %p135
    %p137 = scmp.ne.s32.totalorder %s126, %s129
    %p138 = scmp.eq.s32.totalorder %s16, 1
    %p139 = por %p137, %p138
    %p140 = scmp.ne.s32.totalorder %s129, %s130
    %p141 = scmp.eq.s32.totalorder %s16, 0
    %p142 = por %p140, %p141
    %p143 = scmp.ne.s32.totalorder %s129, %s130
    %p144 = scmp.eq.s32.totalorder %s17, 1
    %p145 = por %p143, %p144
    %p147 = scmp.ne.s32.totalorder %s130, %s146
    %p148 = scmp.eq.s32.totalorder %s17, 0
    %p149 = por %p147, %p148
    %s150 = ssub.s32 %s18, %s37
    %s151 = ssub.s32 %s20, %s29
    %s152 = sor.u32 %s150, %s151
    %p153 = scmp.eq.s32.totalorder %s152, 0
    %s155 = sadd.s32 %s154, 1
    %s156 = scalar_select %p153, %s154, %s155
    %p159 = pneg %p153
    %p160 = scmp.eq.s32.totalorder %s11, 1
    %p161 = por %p159, %p160
    %p162 = scmp.ne.s32.totalorder %s154, %s157
    %p163 = scmp.eq.s32.totalorder %s11, 0
    %p164 = por %p162, %p163
    %p165 = scmp.ne.s32.totalorder %s154, %s157
    %p166 = scmp.eq.s32.totalorder %s16, 1
    %p167 = por %p165, %p166
    %p168 = scmp.ne.s32.totalorder %s157, %s158
    %p169 = scmp.eq.s32.totalorder %s16, 0
    %p170 = por %p168, %p169
    %p171 = scmp.ne.s32.totalorder %s157, %s158
    %p172 = scmp.eq.s32.totalorder %s17, 1
    %p173 = por %p171, %p172
    %p175 = scmp.ne.s32.totalorder %s158, %s174
    %p176 = scmp.eq.s32.totalorder %s17, 0
    %p177 = por %p175, %p176
    %s178 = ssub.s32 %s18, %s37
    %s179 = ssub.s32 %s19, %s33
    %s180 = sor.u32 %s178, %s179
    %p181 = scmp.eq.s32.totalorder %s180, 0
    %s183 = sadd.s32 %s182, 1
    %s184 = scalar_select %p181, %s182, %s183
    %p187 = pneg %p181
    %p188 = scmp.eq.s32.totalorder %s11, 1
    %p189 = por %p187, %p188
    %p190 = scmp.ne.s32.totalorder %s182, %s185
    %p191 = scmp.eq.s32.totalorder %s11, 0
    %p192 = por %p190, %p191
    %p193 = scmp.ne.s32.totalorder %s182, %s185
    %p194 = scmp.eq.s32.totalorder %s16, 1
    %p195 = por %p193, %p194
    %p196 = scmp.ne.s32.totalorder %s185, %s186
    %p197 = scmp.eq.s32.totalorder %s16, 0
    %p198 = por %p196, %p197
    %p199 = scmp.ne.s32.totalorder %s185, %s186
    %p200 = scmp.eq.s32.totalorder %s17, 1
    %p201 = por %p199, %p200
    %p203 = scmp.ne.s32.totalorder %s186, %s202
    %p204 = scmp.eq.s32.totalorder %s17, 0
    %p205 = por %p203, %p204
    %p206 = scmp.le.s32.totalorder 1, %s11
    %p207 = scmp.lt.s32.totalorder %s11, 3
    %p208 = pnand %p206, %p207
    %p209 = pneg %p208
    // Predicated region
    $region9: #{bart_attention_forward.4} parent=5 // pred_check
      _
    $region10: #{bart_attention_forward.4} parent=5 // pred_check_branch
      %211 = sbr.rel (%p208) target = $region12
    $region11: #{bart_attention_forward.4} parent=5 // pred_region
      %s212 = ssub.s32 %s11, 1
      // Predicated region
      $region13: #{bart_attention_forward.4} parent=11 // pred_check
        %p213 = pneg %p142
      $region14: #{bart_attention_forward.4} parent=11 // pred_check_branch
        %215 = sbr.rel (%p213) target = $region16
      $region15: #{bart_attention_forward.4} parent=11 // pred_region
        %p216 = scmp.lt.s32.totalorder %s22, 0
        %s217 = scalar_select %p216, %s22, 0
        %p218 = scmp.lt.s32.totalorder %s23, 0
        %s219 = scalar_select %p218, %s23, 0
        %s220 = sadd.s32 %s219, %s217
        %s221 = smul.addr %s220, 8
        %s222 = scalar_lea.vmem %s3, %s221
      $region16: #{bart_attention_forward.4} parent=11 // pred_fallthru
        _
    $region12: #{bart_attention_forward.4} parent=5 // pred_fallthru
      _
    %p223 = scmp.lt.s32.totalorder %s11, 2
    // Predicated region
    $region17: #{bart_attention_forward.4} parent=5 // pred_check
      %p224 = pneg %p223
    $region18: #{bart_attention_forward.4} parent=5 // pred_check_branch
      %226 = sbr.rel (%p224) target = $region20
    $region19: #{bart_attention_forward.4} parent=5 // pred_region
      // Predicated region
      $region21: #{bart_attention_forward.4} parent=19 // pred_check
        %p227 = pneg %p52
      $region22: #{bart_attention_forward.4} parent=19 // pred_check_branch
        %229 = sbr.rel (%p227) target = $region24
      $region23: #{bart_attention_forward.4} parent=19 // pred_region
        %p230 = scmp.lt.s32.totalorder %s18, 1
        %s231 = scalar_select %p230, %s18, 1
        %p232 = scmp.lt.s32.totalorder %s19, 0
        %s233 = scalar_select %p232, %s19, 0
        %s234 = smul.addr %s231, 4
        %s235 = sadd.s32 %s233, %s234
        %s236 = smul.addr %s235, 4
        %s237 = scalar_lea.vmem %s0, %s236
      $region24: #{bart_attention_forward.4} parent=19 // pred_fallthru
        _
      // Predicated region
      $region25: #{bart_attention_forward.4} parent=19 // pred_check
        %p238 = pneg %p80
      $region26: #{bart_attention_forward.4} parent=19 // pred_check_branch
        %240 = sbr.rel (%p238) target = $region28
      $region27: #{bart_attention_forward.4} parent=19 // pred_region
        %p241 = scmp.lt.s32.totalorder %s18, 1
        %s242 = scalar_select %p241, %s18, 1
        %p243 = scmp.lt.s32.totalorder %s20, 0
        %s244 = scalar_select %p243, %s20, 0
        %s245 = smul.addr %s242, 4
        %s246 = sadd.s32 %s244, %s245
        %s247 = smul.addr %s246, 4
        %s248 = scalar_lea.vmem %s1, %s247
      $region28: #{bart_attention_forward.4} parent=19 // pred_fallthru
        _
      // Predicated region
      $region29: #{bart_attention_forward.4} parent=19 // pred_check
        %p249 = pneg %p108
      $region30: #{bart_attention_forward.4} parent=19 // pred_check_branch
        %251 = sbr.rel (%p249) target = $region32
      $region31: #{bart_attention_forward.4} parent=19 // pred_region
        %p252 = scmp.lt.s32.totalorder %s18, 1
        %s253 = scalar_select %p252, %s18, 1
        %p254 = scmp.lt.s32.totalorder %s20, 0
        %s255 = scalar_select %p254, %s20, 0
        %s256 = smul.addr %s253, 4
        %s257 = sadd.s32 %s255, %s256
        %s258 = smul.addr %s257, 4
        %s259 = scalar_lea.vmem %s2, %s258
      $region32: #{bart_attention_forward.4} parent=19 // pred_fallthru
        _
      // Predicated region
      $region33: #{bart_attention_forward.4} parent=19 // pred_check
        %p260 = pneg %p164
      $region34: #{bart_attention_forward.4} parent=19 // pred_check_branch
        %262 = sbr.rel (%p260) target = $region36
      $region35: #{bart_attention_forward.4} parent=19 // pred_region
        %p263 = scmp.lt.s32.totalorder %s18, 1
        %s264 = scalar_select %p263, %s18, 1
        %p265 = scmp.lt.s32.totalorder %s20, 0
        %s266 = scalar_select %p265, %s20, 0
        %s267 = sadd.s32 %s266, %s264
        %s268 = scalar_lea.vmem %s4, %s267
      $region36: #{bart_attention_forward.4} parent=19 // pred_fallthru
        _
    $region20: #{bart_attention_forward.4} parent=5 // pred_fallthru
      _
    %p269 = scmp.le.s32.totalorder 1, %s11
    %p270 = scmp.lt.s32.totalorder %s11, 3
    %p271 = pnand %p269, %p270
    %p272 = pneg %p271
    // Predicated region
    $region37: #{bart_attention_forward.4} parent=5 // pred_check
      _
    $region38: #{bart_attention_forward.4} parent=5 // pred_check_branch
      %274 = sbr.rel (%p271) target = $region40
    $region39: #{bart_attention_forward.4} parent=5 // pred_region
      %s275 = ssub.s32 %s11, 1
      %p276 = scmp.lt.s32.totalorder %s21, 1
      %s277 = scalar_select %p276, %s21, 1
      %p278 = scmp.lt.s32.totalorder %s22, 0
      %s279 = scalar_select %p278, %s22, 0
      %s280 = smul.addr %s277, 4
      %s281 = sadd.s32 %s279, %s280
      %s282 = smul.addr %s281, 4
      %s283 = scalar_lea.vmem %s0, %s282
      %p284 = pneg %p58
      %p285 = pneg %p55
      %p286 = scmp.lt.s32.totalorder %s21, 1
      %s287 = scalar_select %p286, %s21, 1
      %p288 = scmp.lt.s32.totalorder %s23, 0
      %s289 = scalar_select %p288, %s23, 0
      %s290 = smul.addr %s287, 4
      %s291 = sadd.s32 %s289, %s290
      %s292 = smul.addr %s291, 4
      %s293 = scalar_lea.vmem %s1, %s292
      %p294 = pneg %p86
      %p295 = pneg %p83
      %p296 = scmp.lt.s32.totalorder %s21, 1
      %s297 = scalar_select %p296, %s21, 1
      %p298 = scmp.lt.s32.totalorder %s23, 0
      %s299 = scalar_select %p298, %s23, 0
      %s300 = smul.addr %s297, 4
      %s301 = sadd.s32 %s299, %s300
      %s302 = smul.addr %s301, 4
      %s303 = scalar_lea.vmem %s2, %s302
      %p304 = pneg %p114
      %p305 = pneg %p111
      %p306 = scmp.lt.s32.totalorder %s22, 0
      %s307 = scalar_select %p306, %s22, 0
      %p308 = scmp.lt.s32.totalorder %s23, 0
      %s309 = scalar_select %p308, %s23, 0
      %s310 = sadd.s32 %s309, %s307
      %s311 = smul.addr %s310, 8
      %s312 = scalar_lea.vmem %s3, %s311
      %p313 = pneg %p142
      %p314 = pneg %p139
      %p315 = scmp.lt.s32.totalorder %s21, 1
      %s316 = scalar_select %p315, %s21, 1
      %p317 = scmp.lt.s32.totalorder %s23, 0
      %s318 = scalar_select %p317, %s23, 0
      %s319 = sadd.s32 %s318, %s316
      %s320 = scalar_lea.vmem %s4, %s319
      %p321 = pneg %p170
      %p322 = pneg %p167
      %p323 = pneg %p198
      %p324 = pneg %p195
      %p325 = scmp.lt.s32.totalorder %s21, 1
      %s326 = scalar_select %p325, %s21, 1
      %p327 = scmp.lt.s32.totalorder %s22, 0
      %s328 = scalar_select %p327, %s22, 0
      %s329 = smul.addr %s326, 4
      %s330 = sadd.s32 %s328, %s329
      %s331 = smul.addr %s330, 4
      %s332 = scalar_lea.vmem %s5, %s331
      %p333 = scmp.lt.s32.totalorder %s21, 1
      %s334 = scalar_select %p333, %s21, 1
      %p335 = scmp.lt.s32.totalorder %s22, 0
      %s336 = scalar_select %p335, %s22, 0
      %s337 = smul.addr %s334, 4
      %s338 = sadd.s32 %s336, %s337
      %s339 = smul.addr %s338, 4
      %s340 = scalar_lea.vmem %s0, %s339
      %p341 = scmp.lt.s32.totalorder %s21, 1
      %s342 = scalar_select %p341, %s21, 1
      %p343 = scmp.lt.s32.totalorder %s23, 0
      %s344 = scalar_select %p343, %s23, 0
      %s345 = smul.addr %s342, 4
      %s346 = sadd.s32 %s344, %s345
      %s347 = smul.addr %s346, 4
      %s348 = scalar_lea.vmem %s1, %s347
      %p349 = scmp.lt.s32.totalorder %s21, 1
      %s350 = scalar_select %p349, %s21, 1
      %p351 = scmp.lt.s32.totalorder %s23, 0
      %s352 = scalar_select %p351, %s23, 0
      %s353 = smul.addr %s350, 4
      %s354 = sadd.s32 %s352, %s353
      %s355 = smul.addr %s354, 4
      %s356 = scalar_lea.vmem %s2, %s355
      %p357 = scmp.lt.s32.totalorder %s22, 0
      %s358 = scalar_select %p357, %s22, 0
      %p359 = scmp.lt.s32.totalorder %s23, 0
      %s360 = scalar_select %p359, %s23, 0
      %s361 = sadd.s32 %s360, %s358
      %s362 = smul.addr %s361, 8
      %s363 = scalar_lea.vmem %s3, %s362
      %p364 = scmp.lt.s32.totalorder %s21, 1
      %s365 = scalar_select %p364, %s21, 1
      %p366 = scmp.lt.s32.totalorder %s23, 0
      %s367 = scalar_select %p366, %s23, 0
      %s368 = sadd.s32 %s367, %s365
      %s369 = scalar_lea.vmem %s4, %s368
      %p370 = scmp.lt.s32.totalorder %s21, 1
      %s371 = scalar_select %p370, %s21, 1
      %p372 = scmp.lt.s32.totalorder %s22, 0
      %s373 = scalar_select %p372, %s22, 0
      %s374 = smul.addr %s371, 4
      %s375 = sadd.s32 %s373, %s374
      %s376 = smul.addr %s375, 4
      %s377 = scalar_lea.vmem %s5, %s376
      %p379 = scmp.eq.s32.totalorder %s23, 0
      // Predicated region
      $region41: #{bart_attention_forward.4} parent=39 // pred_check
        %p380 = pneg %p379
      $region42: #{bart_attention_forward.4} parent=39 // pred_check_branch
        %382 = sbr.rel (%p380) target = $region44
      $region43: #{bart_attention_forward.4} parent=39 // pred_region
        %vm383 = vcmask 7168
        %384 = vst.msk [vmem:[#allocation2] sm:$0xff] %vm383, -1e+30
        %385 = vst.msk [vmem:[#allocation2 + $0x8] sm:$0xff] %vm383, -1e+30
        %386 = vst.msk [vmem:[#allocation2 + $0x10] sm:$0xff] %vm383, -1e+30
        %387 = vst.msk [vmem:[#allocation2 + $0x18] sm:$0xff] %vm383, -1e+30
        %388 = vst.msk [vmem:[#allocation3] sm:$0xff] %vm383, 0.0
        %389 = vst.msk [vmem:[#allocation3 + $0x8] sm:$0xff] %vm383, 0.0
        %390 = vst.msk [vmem:[#allocation3 + $0x10] sm:$0xff] %vm383, 0.0
        %391 = vst.msk [vmem:[#allocation3 + $0x18] sm:$0xff] %vm383, 0.0
        %vm392 = vcmask 64512
        %393 = vst.msk [vmem:[#allocation4] sm:$0xff] %vm392, 0.0
        %394 = vst.msk [vmem:[#allocation4 + $0x8] sm:$0xff] %vm392, 0.0
        %395 = vst.msk [vmem:[#allocation4 + $0x10] sm:$0xff] %vm392, 0.0
        %396 = vst.msk [vmem:[#allocation4 + $0x18] sm:$0xff] %vm392, 0.0
      $region44: #{bart_attention_forward.4} parent=39 // pred_fallthru
        _
      %v397 = vld [vmem:[%s340] sm:$0xf]
      %v398 = vld [vmem:[%s340 + $0x4] sm:$0xf]
      %v399 = vld [vmem:[%s340 + $0x8] sm:$0xf]
      %v400 = vld [vmem:[%s340 + $0xc] sm:$0xf]
      %v401 = vld [vmem:[%s348] sm:$0xf]
      %v402 = vld [vmem:[%s348 + $0x4] sm:$0xf]
      %v403 = vld [vmem:[%s348 + $0x8] sm:$0xf]
      %v404 = vld [vmem:[%s348 + $0xc] sm:$0xf]
      %v405 = vld [vmem:[%s356] sm:$0xf]
      %v406 = vld [vmem:[%s356 + $0x4] sm:$0xf]
      %v407 = vld [vmem:[%s356 + $0x8] sm:$0xf]
      %v408 = vld [vmem:[%s356 + $0xc] sm:$0xf]
      %vm409 = vcmask 64512
      %v411 = vsel %vm409, %v397, 0
      %v414 = vsel %vm409, %v401, 0
      %416 = vmatprep.subr.bf16.mxu0 0
      %417 = vmatpush1.bf16.xpose.msra.mxu0 %v414
      %418 = vmatprep.subr.bf16.mxu0 0
      %419 = vmatpush1.bf16.xpose.msra.mxu0 0
      %420 = vmatprep.subr.bf16.mxu0 0
      %421 = vmatpush1.bf16.xpose.msra.mxu0 0
      %422 = vmatprep.subr.bf16.mxu0 0
      %423 = vmatpush1.bf16.xpose.msra.mxu0 0
      %424 = vmatprep.subr.bf16.mxu0 0
      %425 = vmatpush1.bf16.xpose.msra.mxu0 0
      %426 = vmatprep.subr.bf16.mxu0 0
      %427 = vmatpush1.bf16.xpose.msra.mxu0 0
      %428 = vmatprep.subr.bf16.mxu0 0
      %429 = vmatpush1.bf16.xpose.msra.mxu0 0
      %430 = vmatprep.subr.bf16.mxu0 0
      %431 = vmatpush1.bf16.xpose.msra.mxu0 0
      %432 = vmatprep.subr.bf16.mxu0 0
      %433 = vmatpush1.bf16.xpose.msra.mxu0 0
      %434 = vmatprep.subr.bf16.mxu0 0
      %435 = vmatpush1.bf16.xpose.msra.mxu0 0
      %436 = vmatprep.subr.bf16.mxu0 0
      %437 = vmatpush1.bf16.xpose.msra.mxu0 0
      %438 = vmatprep.subr.bf16.mxu0 0
      %439 = vmatpush1.bf16.xpose.msra.mxu0 0
      %440 = vmatprep.subr.bf16.mxu0 0
      %441 = vmatpush1.bf16.xpose.msra.mxu0 0
      %442 = vmatprep.subr.bf16.mxu0 0
      %443 = vmatpush1.bf16.xpose.msra.mxu0 0
      %444 = vmatprep.subr.bf16.mxu0 0
      %445 = vmatpush1.bf16.xpose.msra.mxu0 0
      %446 = vmatprep.subr.bf16.mxu0 0
      %447 = vmatpush1.bf16.xpose.msra.mxu0 0
      %448 = vmatprep.mubr.bf16.mxu0 0
      %449 = vmatmul.mubr.bf16.gmra.mrb[0].mxu0 %v411
      %v450 = vpop.f32.mrb[0].mxu0
      %v451 = vadd.f32 0.0, %v450
      %v452 = vpop.f32.mrb[0].mxu0
      %v453 = vpop.f32.mrb[0].mxu0
      %v454 = vpop.f32.mrb[0].mxu0
      %455 = vdwg.mxu0
      %v457 = vsel %vm409, %v398, 0
      %v460 = vsel %vm409, %v402, 0
      %462 = vmatprep.subr.bf16.mxu0 0
      %463 = vmatpush1.bf16.xpose.msra.mxu0 %v460
      %464 = vmatprep.subr.bf16.mxu0 0
      %465 = vmatpush1.bf16.xpose.msra.mxu0 0
      %466 = vmatprep.subr.bf16.mxu0 0
      %467 = vmatpush1.bf16.xpose.msra.mxu0 0
      %468 = vmatprep.subr.bf16.mxu0 0
      %469 = vmatpush1.bf16.xpose.msra.mxu0 0
      %470 = vmatprep.subr.bf16.mxu0 0
      %471 = vmatpush1.bf16.xpose.msra.mxu0 0
      %472 = vmatprep.subr.bf16.mxu0 0
      %473 = vmatpush1.bf16.xpose.msra.mxu0 0
      %474 = vmatprep.subr.bf16.mxu0 0
      %475 = vmatpush1.bf16.xpose.msra.mxu0 0
      %476 = vmatprep.subr.bf16.mxu0 0
      %477 = vmatpush1.bf16.xpose.msra.mxu0 0
      %478 = vmatprep.subr.bf16.mxu0 0
      %479 = vmatpush1.bf16.xpose.msra.mxu0 0
      %480 = vmatprep.subr.bf16.mxu0 0
      %481 = vmatpush1.bf16.xpose.msra.mxu0 0
      %482 = vmatprep.subr.bf16.mxu0 0
      %483 = vmatpush1.bf16.xpose.msra.mxu0 0
      %484 = vmatprep.subr.bf16.mxu0 0
      %485 = vmatpush1.bf16.xpose.msra.mxu0 0
      %486 = vmatprep.subr.bf16.mxu0 0
      %487 = vmatpush1.bf16.xpose.msra.mxu0 0
      %488 = vmatprep.subr.bf16.mxu0 0
      %489 = vmatpush1.bf16.xpose.msra.mxu0 0
      %490 = vmatprep.subr.bf16.mxu0 0
      %491 = vmatpush1.bf16.xpose.msra.mxu0 0
      %492 = vmatprep.subr.bf16.mxu0 0
      %493 = vmatpush1.bf16.xpose.msra.mxu0 0
      %494 = vmatprep.mubr.bf16.mxu0 0
      %495 = vmatmul.mubr.bf16.gmra.mrb[0].mxu0 %v457
      %v496 = vpop.f32.mrb[0].mxu0
      %v497 = vadd.f32 0.0, %v496
      %v498 = vpop.f32.mrb[0].mxu0
      %v499 = vpop.f32.mrb[0].mxu0
      %v500 = vpop.f32.mrb[0].mxu0
      %501 = vdwg.mxu0
      %v503 = vsel %vm409, %v399, 0
      %v506 = vsel %vm409, %v403, 0
      %508 = vmatprep.subr.bf16.mxu0 0
      %509 = vmatpush1.bf16.xpose.msra.mxu0 %v506
      %510 = vmatprep.subr.bf16.mxu0 0
      %511 = vmatpush1.bf16.xpose.msra.mxu0 0
      %512 = vmatprep.subr.bf16.mxu0 0
      %513 = vmatpush1.bf16.xpose.msra.mxu0 0
      %514 = vmatprep.subr.bf16.mxu0 0
      %515 = vmatpush1.bf16.xpose.msra.mxu0 0
      %516 = vmatprep.subr.bf16.mxu0 0
      %517 = vmatpush1.bf16.xpose.msra.mxu0 0
      %518 = vmatprep.subr.bf16.mxu0 0
      %519 = vmatpush1.bf16.xpose.msra.mxu0 0
      %520 = vmatprep.subr.bf16.mxu0 0
      %521 = vmatpush1.bf16.xpose.msra.mxu0 0
      %522 = vmatprep.subr.bf16.mxu0 0
      %523 = vmatpush1.bf16.xpose.msra.mxu0 0
      %524 = vmatprep.subr.bf16.mxu0 0
      %525 = vmatpush1.bf16.xpose.msra.mxu0 0
      %526 = vmatprep.subr.bf16.mxu0 0
      %527 = vmatpush1.bf16.xpose.msra.mxu0 0
      %528 = vmatprep.subr.bf16.mxu0 0
      %529 = vmatpush1.bf16.xpose.msra.mxu0 0
      %530 = vmatprep.subr.bf16.mxu0 0
      %531 = vmatpush1.bf16.xpose.msra.mxu0 0
      %532 = vmatprep.subr.bf16.mxu0 0
      %533 = vmatpush1.bf16.xpose.msra.mxu0 0
      %534 = vmatprep.subr.bf16.mxu0 0
      %535 = vmatpush1.bf16.xpose.msra.mxu0 0
      %536 = vmatprep.subr.bf16.mxu0 0
      %537 = vmatpush1.bf16.xpose.msra.mxu0 0
      %538 = vmatprep.subr.bf16.mxu0 0
      %539 = vmatpush1.bf16.xpose.msra.mxu0 0
      %540 = vmatprep.mubr.bf16.mxu0 0
      %541 = vmatmul.mubr.bf16.gmra.mrb[0].mxu0 %v503
      %v542 = vpop.f32.mrb[0].mxu0
      %v543 = vadd.f32 0.0, %v542
      %v544 = vpop.f32.mrb[0].mxu0
      %v545 = vpop.f32.mrb[0].mxu0
      %v546 = vpop.f32.mrb[0].mxu0
      %547 = vdwg.mxu0
      %v549 = vsel %vm409, %v400, 0
      %v552 = vsel %vm409, %v404, 0
      %554 = vmatprep.subr.bf16.mxu0 0
      %555 = vmatpush1.bf16.xpose.msra.mxu0 %v552
      %556 = vmatprep.subr.bf16.mxu0 0
      %557 = vmatpush1.bf16.xpose.msra.mxu0 0
      %558 = vmatprep.subr.bf16.mxu0 0
      %559 = vmatpush1.bf16.xpose.msra.mxu0 0
      %560 = vmatprep.subr.bf16.mxu0 0
      %561 = vmatpush1.bf16.xpose.msra.mxu0 0
      %562 = vmatprep.subr.bf16.mxu0 0
      %563 = vmatpush1.bf16.xpose.msra.mxu0 0
      %564 = vmatprep.subr.bf16.mxu0 0
      %565 = vmatpush1.bf16.xpose.msra.mxu0 0
      %566 = vmatprep.subr.bf16.mxu0 0
      %567 = vmatpush1.bf16.xpose.msra.mxu0 0
      %568 = vmatprep.subr.bf16.mxu0 0
      %569 = vmatpush1.bf16.xpose.msra.mxu0 0
      %570 = vmatprep.subr.bf16.mxu0 0
      %571 = vmatpush1.bf16.xpose.msra.mxu0 0
      %572 = vmatprep.subr.bf16.mxu0 0
      %573 = vmatpush1.bf16.xpose.msra.mxu0 0
      %574 = vmatprep.subr.bf16.mxu0 0
      %575 = vmatpush1.bf16.xpose.msra.mxu0 0
      %576 = vmatprep.subr.bf16.mxu0 0
      %577 = vmatpush1.bf16.xpose.msra.mxu0 0
      %578 = vmatprep.subr.bf16.mxu0 0
      %579 = vmatpush1.bf16.xpose.msra.mxu0 0
      %580 = vmatprep.subr.bf16.mxu0 0
      %581 = vmatpush1.bf16.xpose.msra.mxu0 0
      %582 = vmatprep.subr.bf16.mxu0 0
      %583 = vmatpush1.bf16.xpose.msra.mxu0 0
      %584 = vmatprep.subr.bf16.mxu0 0
      %585 = vmatpush1.bf16.xpose.msra.mxu0 0
      %586 = vmatprep.mubr.bf16.mxu0 0
      %587 = vmatmul.mubr.bf16.gmra.mrb[0].mxu0 %v549
      %v588 = vpop.f32.mrb[0].mxu0
      %v589 = vadd.f32 0.0, %v588
      %v590 = vpop.f32.mrb[0].mxu0
      %v591 = vpop.f32.mrb[0].mxu0
      %v592 = vpop.f32.mrb[0].mxu0
      %593 = vdwg.mxu0
      %v594 = vmul.f32 %v451, 0.35355338
      %v595 = vmul.f32 %v497, 0.35355338
      %v596 = vmul.f32 %v543, 0.35355338
      %v597 = vmul.f32 %v589, 0.35355338
      %v598 = vld [vmem:[%s363] sm:$0xff]
      %v599 = vld [vmem:[%s369] sm:$0x1]
      %v601 = vlaneseq
      %v602 = vshrl.u32 %v601, 7
      %v603 = vsub.s32 0, %v602
      %v604 = vrot.slane %v599, %v603
      %v606 = vadd.f32 %v598, %v604
      %vm607 = vcmp.gt.f32.partialorder %v606, 0.0
      %v608 = vsel %vm607, 1, 0
      %vm609 = vcmp.eq.s32.totalorder %v608, 1
      %v610 = vsel %vm609, %v594, -1e+30
      %v611 = vsel %vm609, %v595, -1e+30
      %v612 = vsel %vm609, %v596, -1e+30
      %v613 = vsel %vm609, %v597, -1e+30
      %v614 = vld [vmem:[#allocation2] sm:$0xff]
      %v615 = vld [vmem:[#allocation2 + $0x8] sm:$0xff]
      %v616 = vld [vmem:[#allocation2 + $0x10] sm:$0xff]
      %v617 = vld [vmem:[#allocation2 + $0x18] sm:$0xff]
      %v618 = vsel %vm409, %v610, -inf
      %619 = vmax.xlane.f32.xlu0 %v618
      %v620 = vpop.xlane.xlu0 %619
      %v621 = vsel %vm409, %v611, -inf
      %622 = vmax.xlane.f32.xlu0 %v621
      %v623 = vpop.xlane.xlu0 %622
      %v624 = vsel %vm409, %v612, -inf
      %625 = vmax.xlane.f32.xlu0 %v624
      %v626 = vpop.xlane.xlu0 %625
      %v627 = vsel %vm409, %v613, -inf
      %628 = vmax.xlane.f32.xlu0 %v627
      %v629 = vpop.xlane.xlu0 %628
      %v630 = vmax.f32 %v614, %v620
      %v631 = vmax.f32 %v615, %v623
      %v632 = vmax.f32 %v616, %v626
      %v633 = vmax.f32 %v617, %v629
      %v634 = vsub.f32 %v614, %v630
      %v635 = vsub.f32 %v615, %v631
      %v636 = vsub.f32 %v616, %v632
      %v637 = vsub.f32 %v617, %v633
      %v638 = vmul.f32 %v634, 1.442695
      %v639 = vpow.pop %v638
      %v640 = vmul.f32 %v635, 1.442695
      %v641 = vpow.pop %v640
      %v642 = vmul.f32 %v636, 1.442695
      %v643 = vpow.pop %v642
      %v644 = vmul.f32 %v637, 1.442695
      %v645 = vpow.pop %v644
      %647 = vset.pattern.permute.xlu0 0
      %648 = vperm.xlu0 %647, %v630
      %v649 = vpop.permute.xlu0 %648
      %652 = vset.pattern.permute.xlu0 0
      %653 = vperm.xlu0 %652, %v631
      %v654 = vpop.permute.xlu0 %653
      %657 = vset.pattern.permute.xlu0 0
      %658 = vperm.xlu0 %657, %v632
      %v659 = vpop.permute.xlu0 %658
      %662 = vset.pattern.permute.xlu0 0
      %663 = vperm.xlu0 %662, %v633
      %v664 = vpop.permute.xlu0 %663
      %v666 = vsub.f32 %v610, %v649
      %v667 = vsub.f32 %v611, %v654
      %v668 = vsub.f32 %v612, %v659
      %v669 = vsub.f32 %v613, %v664
      %v670 = vmul.f32 %v666, 1.442695
      %v671 = vpow.pop %v670
      %v672 = vmul.f32 %v667, 1.442695
      %v673 = vpow.pop %v672
      %v674 = vmul.f32 %v668, 1.442695
      %v675 = vpow.pop %v674
      %v676 = vmul.f32 %v669, 1.442695
      %v677 = vpow.pop %v676
      %v678 = vld [vmem:[#allocation3] sm:$0xff]
      %v679 = vld [vmem:[#allocation3 + $0x8] sm:$0xff]
      %v680 = vld [vmem:[#allocation3 + $0x10] sm:$0xff]
      %v681 = vld [vmem:[#allocation3 + $0x18] sm:$0xff]
      %v682 = vmul.f32 %v639, %v678
      %v683 = vmul.f32 %v641, %v679
      %v684 = vmul.f32 %v643, %v680
      %v685 = vmul.f32 %v645, %v681
      %v686 = vsel %vm409, %v671, 0.0
      %687 = vadd.xlane.f32.xlu0 %v686
      %v688 = vpop.xlane.xlu0 %687
      %v689 = vsel %vm409, %v673, 0.0
      %690 = vadd.xlane.f32.xlu0 %v689
      %v691 = vpop.xlane.xlu0 %690
      %v692 = vsel %vm409, %v675, 0.0
      %693 = vadd.xlane.f32.xlu0 %v692
      %v694 = vpop.xlane.xlu0 %693
      %v695 = vsel %vm409, %v677, 0.0
      %696 = vadd.xlane.f32.xlu0 %v695
      %v697 = vpop.xlane.xlu0 %696
      %v698 = vadd.f32 %v682, %v688
      %v699 = vadd.f32 %v683, %v691
      %v700 = vadd.f32 %v684, %v694
      %v701 = vadd.f32 %v685, %v697
      %vm702 = vcmask 7168
      %703 = vst.msk [vmem:[#allocation3] sm:$0xff] %vm702, %v698
      %704 = vst.msk [vmem:[#allocation3 + $0x8] sm:$0xff] %vm702, %v699
      %705 = vst.msk [vmem:[#allocation3 + $0x10] sm:$0xff] %vm702, %v700
      %706 = vst.msk [vmem:[#allocation3 + $0x18] sm:$0xff] %vm702, %v701
      %v707 = vld [vmem:[#allocation4] sm:$0xff]
      %v708 = vld [vmem:[#allocation4 + $0x8] sm:$0xff]
      %v709 = vld [vmem:[#allocation4 + $0x10] sm:$0xff]
      %v710 = vld [vmem:[#allocation4 + $0x18] sm:$0xff]
      %712 = vset.pattern.permute.xlu0 0
      %713 = vperm.xlu0 %712, %v639
      %v714 = vpop.permute.xlu0 %713
      %717 = vset.pattern.permute.xlu0 0
      %718 = vperm.xlu0 %717, %v641
      %v719 = vpop.permute.xlu0 %718
      %722 = vset.pattern.permute.xlu0 0
      %723 = vperm.xlu0 %722, %v643
      %v724 = vpop.permute.xlu0 %723
      %727 = vset.pattern.permute.xlu0 0
      %728 = vperm.xlu0 %727, %v645
      %v729 = vpop.permute.xlu0 %728
      %v731 = vmul.f32 %v714, %v707
      %v732 = vmul.f32 %v719, %v708
      %v733 = vmul.f32 %v724, %v709
      %v734 = vmul.f32 %v729, %v710
      %v735 = vpack.c.bf16 %v671, %v671
      %v736 = vpack.c.bf16 %v673, %v673
      %v737 = vpack.c.bf16 %v675, %v675
      %v738 = vpack.c.bf16 %v677, %v677
      %v740 = vsel %vm409, %v735, 0
      %vm742 = vcmask 1043456
      %v744 = vsel %vm742, %v405, 0
      %746 = vmatprep.subr.bf16.mxu0 0
      %747 = vmatpush1.bf16.msra.mxu0 %v744
      %748 = vmatprep.subr.bf16.mxu0 0
      %749 = vmatpush1.bf16.msra.mxu0 0
      %750 = vmatprep.subr.bf16.mxu0 0
      %751 = vmatpush1.bf16.msra.mxu0 0
      %752 = vmatprep.subr.bf16.mxu0 0
      %753 = vmatpush1.bf16.msra.mxu0 0
      %754 = vmatprep.subr.bf16.mxu0 0
      %755 = vmatpush1.bf16.msra.mxu0 0
      %756 = vmatprep.subr.bf16.mxu0 0
      %757 = vmatpush1.bf16.msra.mxu0 0
      %758 = vmatprep.subr.bf16.mxu0 0
      %759 = vmatpush1.bf16.msra.mxu0 0
      %760 = vmatprep.subr.bf16.mxu0 0
      %761 = vmatpush1.bf16.msra.mxu0 0
      %762 = vmatprep.subr.bf16.mxu0 0
      %763 = vmatpush1.bf16.msra.mxu0 0
      %764 = vmatprep.subr.bf16.mxu0 0
      %765 = vmatpush1.bf16.msra.mxu0 0
      %766 = vmatprep.subr.bf16.mxu0 0
      %767 = vmatpush1.bf16.msra.mxu0 0
      %768 = vmatprep.subr.bf16.mxu0 0
      %769 = vmatpush1.bf16.msra.mxu0 0
      %770 = vmatprep.subr.bf16.mxu0 0
      %771 = vmatpush1.bf16.msra.mxu0 0
      %772 = vmatprep.subr.bf16.mxu0 0
      %773 = vmatpush1.bf16.msra.mxu0 0
      %774 = vmatprep.subr.bf16.mxu0 0
      %775 = vmatpush1.bf16.msra.mxu0 0
      %776 = vmatprep.subr.bf16.mxu0 0
      %777 = vmatpush1.bf16.msra.mxu0 0
      %778 = vmatprep.mubr.bf16.mxu0 0
      %779 = vmatmul.mubr.bf16.gmra.mrb[0].mxu0 %v740
      %v780 = vpop.f32.mrb[0].mxu0
      %v781 = vadd.f32 0.0, %v780
      %v782 = vpop.f32.mrb[0].mxu0
      %v783 = vpop.f32.mrb[0].mxu0
      %v784 = vpop.f32.mrb[0].mxu0
      %785 = vdwg.mxu0
      %v787 = vsel %vm409, %v736, 0
      %v790 = vsel %vm742, %v406, 0
      %792 = vmatprep.subr.bf16.mxu0 0
      %793 = vmatpush1.bf16.msra.mxu0 %v790
      %794 = vmatprep.subr.bf16.mxu0 0
      %795 = vmatpush1.bf16.msra.mxu0 0
      %796 = vmatprep.subr.bf16.mxu0 0
      %797 = vmatpush1.bf16.msra.mxu0 0
      %798 = vmatprep.subr.bf16.mxu0 0
      %799 = vmatpush1.bf16.msra.mxu0 0
      %800 = vmatprep.subr.bf16.mxu0 0
      %801 = vmatpush1.bf16.msra.mxu0 0
      %802 = vmatprep.subr.bf16.mxu0 0
      %803 = vmatpush1.bf16.msra.mxu0 0
      %804 = vmatprep.subr.bf16.mxu0 0
      %805 = vmatpush1.bf16.msra.mxu0 0
      %806 = vmatprep.subr.bf16.mxu0 0
      %807 = vmatpush1.bf16.msra.mxu0 0
      %808 = vmatprep.subr.bf16.mxu0 0
      %809 = vmatpush1.bf16.msra.mxu0 0
      %810 = vmatprep.subr.bf16.mxu0 0
      %811 = vmatpush1.bf16.msra.mxu0 0
      %812 = vmatprep.subr.bf16.mxu0 0
      %813 = vmatpush1.bf16.msra.mxu0 0
      %814 = vmatprep.subr.bf16.mxu0 0
      %815 = vmatpush1.bf16.msra.mxu0 0
      %816 = vmatprep.subr.bf16.mxu0 0
      %817 = vmatpush1.bf16.msra.mxu0 0
      %818 = vmatprep.subr.bf16.mxu0 0
      %819 = vmatpush1.bf16.msra.mxu0 0
      %820 = vmatprep.subr.bf16.mxu0 0
      %821 = vmatpush1.bf16.msra.mxu0 0
      %822 = vmatprep.subr.bf16.mxu0 0
      %823 = vmatpush1.bf16.msra.mxu0 0
      %824 = vmatprep.mubr.bf16.mxu0 0
      %825 = vmatmul.mubr.bf16.gmra.mrb[0].mxu0 %v787
      %v826 = vpop.f32.mrb[0].mxu0
      %v827 = vadd.f32 0.0, %v826
      %v828 = vpop.f32.mrb[0].mxu0
      %v829 = vpop.f32.mrb[0].mxu0
      %v830 = vpop.f32.mrb[0].mxu0
      %831 = vdwg.mxu0
      %v833 = vsel %vm409, %v737, 0
      %v836 = vsel %vm742, %v407, 0
      %838 = vmatprep.subr.bf16.mxu0 0
      %839 = vmatpush1.bf16.msra.mxu0 %v836
      %840 = vmatprep.subr.bf16.mxu0 0
      %841 = vmatpush1.bf16.msra.mxu0 0
      %842 = vmatprep.subr.bf16.mxu0 0
      %843 = vmatpush1.bf16.msra.mxu0 0
      %844 = vmatprep.subr.bf16.mxu0 0
      %845 = vmatpush1.bf16.msra.mxu0 0
      %846 = vmatprep.subr.bf16.mxu0 0
      %847 = vmatpush1.bf16.msra.mxu0 0
      %848 = vmatprep.subr.bf16.mxu0 0
      %849 = vmatpush1.bf16.msra.mxu0 0
      %850 = vmatprep.subr.bf16.mxu0 0
      %851 = vmatpush1.bf16.msra.mxu0 0
      %852 = vmatprep.subr.bf16.mxu0 0
      %853 = vmatpush1.bf16.msra.mxu0 0
      %854 = vmatprep.subr.bf16.mxu0 0
      %855 = vmatpush1.bf16.msra.mxu0 0
      %856 = vmatprep.subr.bf16.mxu0 0
      %857 = vmatpush1.bf16.msra.mxu0 0
      %858 = vmatprep.subr.bf16.mxu0 0
      %859 = vmatpush1.bf16.msra.mxu0 0
      %860 = vmatprep.subr.bf16.mxu0 0
      %861 = vmatpush1.bf16.msra.mxu0 0
      %862 = vmatprep.subr.bf16.mxu0 0
      %863 = vmatpush1.bf16.msra.mxu0 0
      %864 = vmatprep.subr.bf16.mxu0 0
      %865 = vmatpush1.bf16.msra.mxu0 0
      %866 = vmatprep.subr.bf16.mxu0 0
      %867 = vmatpush1.bf16.msra.mxu0 0
      %868 = vmatprep.subr.bf16.mxu0 0
      %869 = vmatpush1.bf16.msra.mxu0 0
      %870 = vmatprep.mubr.bf16.mxu0 0
      %871 = vmatmul.mubr.bf16.gmra.mrb[0].mxu0 %v833
      %v872 = vpop.f32.mrb[0].mxu0
      %v873 = vadd.f32 0.0, %v872
      %v874 = vpop.f32.mrb[0].mxu0
      %v875 = vpop.f32.mrb[0].mxu0
      %v876 = vpop.f32.mrb[0].mxu0
      %877 = vdwg.mxu0
      %v879 = vsel %vm409, %v738, 0
      %v882 = vsel %vm742, %v408, 0
      %884 = vmatprep.subr.bf16.mxu0 0
      %885 = vmatpush1.bf16.msra.mxu0 %v882
      %886 = vmatprep.subr.bf16.mxu0 0
      %887 = vmatpush1.bf16.msra.mxu0 0
      %888 = vmatprep.subr.bf16.mxu0 0
      %889 = vmatpush1.bf16.msra.mxu0 0
      %890 = vmatprep.subr.bf16.mxu0 0
      %891 = vmatpush1.bf16.msra.mxu0 0
      %892 = vmatprep.subr.bf16.mxu0 0
      %893 = vmatpush1.bf16.msra.mxu0 0
      %894 = vmatprep.subr.bf16.mxu0 0
      %895 = vmatpush1.bf16.msra.mxu0 0
      %896 = vmatprep.subr.bf16.mxu0 0
      %897 = vmatpush1.bf16.msra.mxu0 0
      %898 = vmatprep.subr.bf16.mxu0 0
      %899 = vmatpush1.bf16.msra.mxu0 0
      %900 = vmatprep.subr.bf16.mxu0 0
      %901 = vmatpush1.bf16.msra.mxu0 0
      %902 = vmatprep.subr.bf16.mxu0 0
      %903 = vmatpush1.bf16.msra.mxu0 0
      %904 = vmatprep.subr.bf16.mxu0 0
      %905 = vmatpush1.bf16.msra.mxu0 0
      %906 = vmatprep.subr.bf16.mxu0 0
      %907 = vmatpush1.bf16.msra.mxu0 0
      %908 = vmatprep.subr.bf16.mxu0 0
      %909 = vmatpush1.bf16.msra.mxu0 0
      %910 = vmatprep.subr.bf16.mxu0 0
      %911 = vmatpush1.bf16.msra.mxu0 0
      %912 = vmatprep.subr.bf16.mxu0 0
      %913 = vmatpush1.bf16.msra.mxu0 0
      %914 = vmatprep.subr.bf16.mxu0 0
      %915 = vmatpush1.bf16.msra.mxu0 0
      %916 = vmatprep.mubr.bf16.mxu0 0
      %917 = vmatmul.mubr.bf16.gmra.mrb[0].mxu0 %v879
      %v918 = vpop.f32.mrb[0].mxu0
      %v919 = vadd.f32 0.0, %v918
      %v920 = vpop.f32.mrb[0].mxu0
      %v921 = vpop.f32.mrb[0].mxu0
      %v922 = vpop.f32.mrb[0].mxu0
      %923 = vdwg.mxu0
      %v924 = vadd.f32 %v731, %v781
      %v925 = vadd.f32 %v732, %v827
      %v926 = vadd.f32 %v733, %v873
      %v927 = vadd.f32 %v734, %v919
      %928 = vst.msk [vmem:[#allocation4] sm:$0xff] %vm409, %v924
      %929 = vst.msk [vmem:[#allocation4 + $0x8] sm:$0xff] %vm409, %v925
      %930 = vst.msk [vmem:[#allocation4 + $0x10] sm:$0xff] %vm409, %v926
      %931 = vst.msk [vmem:[#allocation4 + $0x18] sm:$0xff] %vm409, %v927
      %932 = vst.msk [vmem:[#allocation2] sm:$0xff] %vm702, %v630
      %933 = vst.msk [vmem:[#allocation2 + $0x8] sm:$0xff] %vm702, %v631
      %934 = vst.msk [vmem:[#allocation2 + $0x10] sm:$0xff] %vm702, %v632
      %935 = vst.msk [vmem:[#allocation2 + $0x18] sm:$0xff] %vm702, %v633
      // Predicated region
      $region45: #{bart_attention_forward.4} parent=39 // pred_check
        %p936 = pneg %p379
      $region46: #{bart_attention_forward.4} parent=39 // pred_check_branch
        %938 = sbr.rel (%p936) target = $region48
      $region47: #{bart_attention_forward.4} parent=39 // pred_region
        %v939 = vld [vmem:[#allocation3] sm:$0xff]
        %v940 = vld [vmem:[#allocation3 + $0x8] sm:$0xff]
        %v941 = vld [vmem:[#allocation3 + $0x10] sm:$0xff]
        %v942 = vld [vmem:[#allocation3 + $0x18] sm:$0xff]
        %v943 = vrcp.pop %v939
        %v944 = vrcp.pop %v940
        %v945 = vrcp.pop %v941
        %v946 = vrcp.pop %v942
        %v947 = vld [vmem:[#allocation4] sm:$0xff]
        %v948 = vld [vmem:[#allocation4 + $0x8] sm:$0xff]
        %v949 = vld [vmem:[#allocation4 + $0x10] sm:$0xff]
        %v950 = vld [vmem:[#allocation4 + $0x18] sm:$0xff]
        %952 = vset.pattern.permute.xlu0 0
        %953 = vperm.xlu0 %952, %v943
        %v954 = vpop.permute.xlu0 %953
        %957 = vset.pattern.permute.xlu0 0
        %958 = vperm.xlu0 %957, %v944
        %v959 = vpop.permute.xlu0 %958
        %962 = vset.pattern.permute.xlu0 0
        %963 = vperm.xlu0 %962, %v945
        %v964 = vpop.permute.xlu0 %963
        %967 = vset.pattern.permute.xlu0 0
        %968 = vperm.xlu0 %967, %v946
        %v969 = vpop.permute.xlu0 %968
        %v971 = vmul.f32 %v947, %v954
        %v972 = vmul.f32 %v948, %v959
        %v973 = vmul.f32 %v949, %v964
        %v974 = vmul.f32 %v950, %v969
        %v975 = vpack.c.bf16 %v971, %v971
        %v976 = vpack.c.bf16 %v972, %v972
        %v977 = vpack.c.bf16 %v973, %v973
        %v978 = vpack.c.bf16 %v974, %v974
        %vm979 = vcmask 60416
        %980 = vst.msk [vmem:[%s377] sm:$0xf] %vm979, %v975
        %981 = vst.msk [vmem:[%s377 + $0x4] sm:$0xf] %vm979, %v976
        %982 = vst.msk [vmem:[%s377 + $0x8] sm:$0xf] %vm979, %v977
        %983 = vst.msk [vmem:[%s377 + $0xc] sm:$0xf] %vm979, %v978
      $region48: #{bart_attention_forward.4} parent=39 // pred_fallthru
        _
      %p984 = scmp.lt.s32.totalorder %s21, 1
      %s985 = scalar_select %p984, %s21, 1
      %p986 = scmp.lt.s32.totalorder %s22, 0
      %s987 = scalar_select %p986, %s22, 0
      %s988 = smul.addr %s985, 4
      %s989 = sadd.s32 %s987, %s988
      %s990 = smul.addr %s989, 4
      %s991 = scalar_lea.vmem %s5, %s990
      // Predicated region
      $region49: #{bart_attention_forward.4} parent=39 // pred_check
        %p992 = pneg %p195
      $region50: #{bart_attention_forward.4} parent=39 // pred_check_branch
        %994 = sbr.rel (%p992) target = $region52
      $region51: #{bart_attention_forward.4} parent=39 // pred_region
        _
      $region52: #{bart_attention_forward.4} parent=39 // pred_fallthru
        _
    $region40: #{bart_attention_forward.4} parent=5 // pred_fallthru
      _
    %p995 = scmp.le.s32.totalorder 2, %s11
    // Predicated region
    $region53: #{bart_attention_forward.4} parent=5 // pred_check
      %p996 = pneg %p995
    $region54: #{bart_attention_forward.4} parent=5 // pred_check_branch
      %998 = sbr.rel (%p996) target = $region56
    $region55: #{bart_attention_forward.4} parent=5 // pred_region
      %s999 = ssub.s32 %s11, 2
      // Predicated region
      $region57: #{bart_attention_forward.4} parent=55 // pred_check
        %p1000 = pneg %p201
      $region58: #{bart_attention_forward.4} parent=55 // pred_check_branch
        %1002 = sbr.rel (%p1000) target = $region60
      $region59: #{bart_attention_forward.4} parent=55 // pred_region
        %p1003 = scmp.lt.s32.totalorder %s24, 1
        %s1004 = scalar_select %p1003, %s24, 1
        %p1005 = scmp.lt.s32.totalorder %s25, 0
        %s1006 = scalar_select %p1005, %s25, 0
        %s1007 = smul.addr %s1004, 4
        %s1008 = sadd.s32 %s1006, %s1007
        %s1009 = smul.addr %s1008, 4
        %s1010 = scalar_lea.vmem %s5, %s1009
      $region60: #{bart_attention_forward.4} parent=55 // pred_fallthru
        _
    $region56: #{bart_attention_forward.4} parent=5 // pred_fallthru
      _
  $region6: #{bart_attention_forward.4} parent=0 // loop_footer
    %s15 = sadd.s32 1, %s11
  $region7: #{bart_attention_forward.4} parent=0 // loop_footer_branch
    %10 = sbr.rel target = $region3
  $region8: #{bart_attention_forward.4} parent=0 // loop_exit
    _

</llo_original>
